<compile_context>
chip_gen: v7x
topology: tpu7x:2x2x1
jax: 0.10.0
libtpu: 0.0.40
codegen_flags: <defaults>
</compile_context>

<pallas_src>
import functools

import numpy as np

import jax
import jax.numpy as jnp
from jax.experimental import pallas as pl
from jax.experimental.pallas import tpu as pltpu


EMB_DIM = 100
LANES = 128          # padded channel width (lane-dense)
NODE_PAD = 512       # node-count padding multiple (guarantees tm>=256, tk>=512)


def _round_up(x, m):
    return ((x + m - 1) // m) * m


def _pick_tiles(np_nodes):
    """Pick (TM, TK) node tiles.

    tk >= 512 keeps the Np-strided A-row DMAs large and the mem-bound sweep
    near the HBM roofline.  tm is 512 on larger graphs (halves the x re-stream
    vs 256) but capped so dst_tiles >= 2, keeping both v7x TensorCores busy.
    v5e note: tm=256 is already MXU-filling there; the byte reductions
    (bf16 x, block-sparse skip) are the levers on that generation.
    """
    tm = 512 if np_nodes >= 1024 else 256
    tk = 1024 if (np_nodes % 1024 == 0 and np_nodes >= 2048) else 512
    return tm, tk


# ----------------------------------------------------------------------------
# Pallas kernel: one RGCNConv layer over a block-sparse tile schedule.
#   grid = (dst_tiles [parallel], schedule_steps [arbitrary])
#   step s of dst tile m processes nonzero adjacency tile (r_idx[m,s],
#   m, k_idx[m,s]) and accumulates (A @ x_src) @ W_r into the resident output.
#   The output tile is seeded with the hoisted root/bias term at s == 0.
# ----------------------------------------------------------------------------
def _rgcn_conv_kernel(r_idx_ref, k_idx_ref, valid_ref,
                      xk_ref, a_ref, w_ref, init_ref, o_ref, *, apply_relu):
    m = pl.program_id(0)
    s = pl.program_id(1)
    last_s = pl.num_programs(1) - 1

    # Seed with the self/root term (computed in the wrapper with XLA).
    @pl.when(s == 0)
    def _():
        o_ref[...] = init_ref[...]

    # Real (non-padding) schedule step: mean-normalized neighbor aggregation
    # for one nonzero adjacency tile, then the relation transform W_r.
    @pl.when(valid_ref[m, s] == 1)
    def _():
        agg = jnp.dot(a_ref[...], xk_ref[...],
                      preferred_element_type=jnp.float32)       # bf16 MXU, f32 acc
        w_r = w_ref[r_idx_ref[m, s]]                            # (C, C) f32, VMEM-resident
        o_ref[...] += jnp.dot(agg, w_r, preferred_element_type=jnp.float32)

    if apply_relu:
        @pl.when(s == last_s)
        def _():
            o_ref[...] = jnp.maximum(o_ref[...], 0.0)


def rgcn_conv(x, a_norm, w, root, bias, schedule, *, tm, tk, apply_relu=False):
    """One RGCNConv layer on padded tensors.

    x:        [Np, Cp] float32     zero-padded node features (Cp = 128)
    a_norm:   [R, Np, Np] bfloat16 normalized dense adjacency (rel, dst, src)
    w:        [R, Cp, Cp] float32  fused per-relation transform (att x basis)
    root:     [Cp, Cp] float32
    bias:     [1, Cp]  float32
    schedule: (r_idx, k_idx, valid) int32 [Mt, S] block-sparse tile schedule
    """
    np_nodes, cp = x.shape
    num_rel = w.shape[0]
    r_idx, k_idx, valid = schedule
    mt = np_nodes // tm
    s_steps = r_idx.shape[1]

    # Hoisted root/self term (tiny XLA matmul, fully overlapped) + bf16 src x.
    init = x @ root + bias
    x_src = x.astype(jnp.bfloat16)

    # Real double-buffered VMEM footprint + headroom (well inside v7x 64 MiB).
    footprint = 2 * (tm * tk * 2          # A tile (bf16)
                     + tk * cp * 2        # x src tile (bf16)
                     + num_rel * cp * cp * 4   # W stack (f32, resident)
                     + tm * cp * 4        # init tile (f32)
                     + tm * cp * 4)       # output tile (f32)
    vmem_limit = min(int(footprint * 1.5) + (2 << 20), 48 << 20)

    kernel = functools.partial(_rgcn_conv_kernel, apply_relu=apply_relu)
    return pl.pallas_call(
        kernel,
        out_shape=jax.ShapeDtypeStruct((np_nodes, cp), jnp.float32),
        grid_spec=pltpu.PrefetchScalarGridSpec(
            num_scalar_prefetch=3,
            grid=(mt, s_steps),
            in_specs=[
                # x src tile: data-dependent src-tile index
                pl.BlockSpec((tk, cp),
                             lambda m, s, r, k, v: (k[m, s], 0)),
                # A tile: data-dependent (relation, src-tile); zero tiles skipped
                pl.BlockSpec((None, tm, tk),
                             lambda m, s, r, k, v: (r[m, s], m, k[m, s])),
                # full W stack resident in VMEM
                pl.BlockSpec((num_rel, cp, cp),
                             lambda m, s, r, k, v: (0, 0, 0)),
                # hoisted root/bias seed
                pl.BlockSpec((tm, cp),
                             lambda m, s, r, k, v: (m, 0)),
            ],
            out_specs=pl.BlockSpec((tm, cp),
                                   lambda m, s, r, k, v: (m, 0)),
        ),
        compiler_params=pltpu.CompilerParams(
            dimension_semantics=("parallel", "arbitrary"),
            vmem_limit_bytes=vmem_limit,
        ),
    )(r_idx, k_idx, valid, x_src, a_norm, w, init)


# ----------------------------------------------------------------------------
# Glue: densify the edge list into a degree-normalized adjacency per relation.
# Matches PyG MessagePassing(aggr='mean') with edge_norm applied to messages
# (mean over the total in-degree, across all relations).
# ----------------------------------------------------------------------------
def build_normalized_adjacency(edge_index, edge_type, edge_norm,
                               padded_nodes, num_relations):
    src, dst = edge_index[0], edge_index[1]
    deg = jnp.zeros((padded_nodes,), jnp.float32).at[dst].add(1.0)
    inv_deg = jnp.where(deg > 0, 1.0 / jnp.maximum(deg, 1.0), 0.0)
    a = jnp.zeros((num_relations, padded_nodes, padded_nodes), jnp.float32)
    a = a.at[edge_type, dst, src].add(edge_norm)
    a = a * inv_deg[None, :, None]
    # TODO(synk): for production graph sizes replace this dense O(R*N^2)
    # materialization with a CSR-style build (the kernel already skips all-zero
    # tiles, but the HBM footprint of the dense A is the remaining limiter).
    # TODO(synk): on v7x store A in fp8 (e4m3) / on v6e in int8 with per-tile
    # scale to halve the dominant A stream (needs a precision re-validation).
    return a.astype(jnp.bfloat16)


def build_tile_schedule(edge_index, edge_type, num_relations,
                        padded_nodes, tm, tk):
    """Per-dst-tile list of nonzero (relation, src-tile) adjacency tiles.

    Built host-side from the edge list (no dense scan).  Tiles are padded to
    the max count S across dst tiles; padding steps carry valid=0 and are
    skipped inside the kernel.
    """
    src = np.asarray(edge_index[0])
    dst = np.asarray(edge_index[1])
    et = np.asarray(edge_type)
    mt, kt = padded_nodes // tm, padded_nodes // tk
    nz = np.zeros((num_relations, mt, kt), dtype=bool)
    nz[et, dst // tm, src // tk] = True
    s_max = max(1, int(nz.sum(axis=(0, 2)).max()))
    r_idx = np.zeros((mt, s_max), np.int32)
    k_idx = np.zeros((mt, s_max), np.int32)
    valid = np.zeros((mt, s_max), np.int32)
    for m in range(mt):
        rs, ks = np.nonzero(nz[:, m, :])      # sorted by relation, then src tile
        n = rs.shape[0]
        r_idx[m, :n] = rs
        k_idx[m, :n] = ks
        valid[m, :n] = 1
    return jnp.asarray(r_idx), jnp.asarray(k_idx), jnp.asarray(valid)


def fuse_and_pad_conv_params(p, cp):
    """Precompute W_r = sum_b att[r, b] * basis[b]; zero-pad channels to cp."""
    c = p["root"].shape[0]
    w = jnp.einsum("rb,bio->rio", p["att"], p["basis"])
    w = jnp.pad(w, ((0, 0), (0, cp - c), (0, cp - c)))
    root = jnp.pad(p["root"], ((0, cp - c), (0, cp - c)))
    bias = jnp.pad(p["bias"], ((0, 0), (0, cp - c)))
    return w, root, bias


# ----------------------------------------------------------------------------
# Parameters (deterministic, mirrors RGCN.__init__ / RGCNConv.__init__ shapes)
# ----------------------------------------------------------------------------
def init_params(key, num_entities, num_relations, num_bases):
    r2 = num_relations * 2
    k_emb, k_rel, k1, k2, k3, k4 = jax.random.split(key, 6)

    def conv_params(k):
        ka, kb, kc, kd = jax.random.split(k, 4)
        bound = 1.0 / float(np.sqrt(num_bases * EMB_DIM))
        return dict(
            basis=jax.random.uniform(ka, (num_bases, EMB_DIM, EMB_DIM),
                                     jnp.float32, -bound, bound),
            att=jax.random.uniform(kb, (r2, num_bases),
                                   jnp.float32, -bound, bound),
            root=jax.random.uniform(kc, (EMB_DIM, EMB_DIM),
                                    jnp.float32, -bound, bound),
            bias=jax.random.uniform(kd, (1, EMB_DIM),
                                    jnp.float32, -bound, bound),
        )

    return dict(
        entity_embedding=jax.random.normal(k_emb, (num_entities, EMB_DIM),
                                           jnp.float32),
        relation_embedding=jax.random.normal(k_rel, (num_relations, EMB_DIM),
                                             jnp.float32),  # unused in forward
        conv1=conv_params(k1),
        conv2=conv_params(k2),
        conv3=conv_params(k3),
        conv4=conv_params(k4),  # defined in __init__ but unused in forward
    )


# ----------------------------------------------------------------------------
# Full RGCN.forward (conv1 is reused three times, exactly as in the PyTorch code)
# ----------------------------------------------------------------------------
def rgcn_forward(params, entity, edge_index, edge_type, edge_norm):
    x = params["entity_embedding"][entity]                       # [N, 100]
    n, c = x.shape
    np_nodes = _round_up(max(n, 8), NODE_PAD)
    r2 = params["conv1"]["att"].shape[0]
    tm, tk = _pick_tiles(np_nodes)

    a_norm = build_normalized_adjacency(edge_index, edge_type, edge_norm,
                                        np_nodes, r2)
    schedule = build_tile_schedule(edge_index, edge_type, r2, np_nodes, tm, tk)
    xp = jnp.pad(x, ((0, np_nodes - n), (0, LANES - c)))

    fused = {name: fuse_and_pad_conv_params(params[name], LANES)
             for name in ("conv1", "conv2", "conv3")}

    def conv(x_in, name, relu=False):
        w, root, bias = fused[name]
        return rgcn_conv(x_in, a_norm, w, root, bias, schedule,
                         tm=tm, tk=tk, apply_relu=relu)

    x1 = conv(xp, "conv1")
    xr = conv(x1, "conv1", relu=True)
    # TODO(synk): F.dropout is identity here (inference / eval-mode semantics).
    x2 = conv(xr, "conv2")
    xr = conv(x2, "conv1", relu=True)
    x3 = conv(xr, "conv3")
    return x3[:n, :c]


# ----------------------------------------------------------------------------
# Pure-JAX reference (edge-list form, f32) for a correctness check.
# ----------------------------------------------------------------------------
def _rgcn_conv_ref(x, edge_index, edge_type, edge_norm, p):
    w = jnp.einsum("rb,bio->rio", p["att"], p["basis"])
    src, dst = edge_index[0], edge_index[1]
    msg = jnp.einsum("ei,eio->eo", x[src], w[edge_type]) * edge_norm[:, None]
    n = x.shape[0]
    sums = jnp.zeros((n, x.shape[1]), jnp.float32).at[dst].add(msg)
    cnt = jnp.zeros((n,), jnp.float32).at[dst].add(1.0)
    agg = sums / jnp.maximum(cnt, 1.0)[:, None]
    return agg + x @ p["root"] + p["bias"]


def rgcn_forward_ref(params, entity, edge_index, edge_type, edge_norm):
    x = params["entity_embedding"][entity]
    c = lambda xi, p: _rgcn_conv_ref(xi, edge_index, edge_type, edge_norm, p)
    x1 = c(x, params["conv1"])
    x = jax.nn.relu(c(x1, params["conv1"]))
    x2 = c(x, params["conv2"])
    x = jax.nn.relu(c(x2, params["conv1"]))
    return c(x, params["conv3"])


if __name__ == "__main__":
    num_entities, num_relations, num_bases = 32, 3, 4
    N, E = 16, 40

    key = jax.random.PRNGKey(0)
    k_params, k_ent, k_ei, k_et, k_en = jax.random.split(key, 5)

    params = init_params(k_params, num_entities, num_relations, num_bases)

    entity = jax.random.randint(k_ent, (N,), 0, num_entities, dtype=jnp.int32)
    edge_index = jax.random.randint(k_ei, (2, E), 0, N, dtype=jnp.int32)
    edge_type = jax.random.randint(k_et, (E,), 0, num_relations * 2,
                                   dtype=jnp.int32)
    edge_norm = jax.random.uniform(k_en, (E,), jnp.float32, 0.1, 1.0)

    out = rgcn_forward(params, entity, edge_index, edge_type, edge_norm)
    out = jax.block_until_ready(out)

    ref = rgcn_forward_ref(params, entity, edge_index, edge_type, edge_norm)
    ref = jax.block_until_ready(ref)

    assert out.shape == (N, EMB_DIM)
    # A_norm and the src-x operand are bf16 (f32 accumulation); with five
    # chained conv calls the rounding compounds, so the tolerance is loosened
    # vs a pure-f32 implementation.
    assert jnp.allclose(out, ref, rtol=5e-2, atol=2e-2), (
        "Pallas RGCN output mismatch vs. reference")

    print("KERNEL_OK")
</pallas_src>

<mosaic_0001>
module attributes {stable_mosaic.version = 11 : i64} {
  func.func @_rgcn_conv_kernel(%arg0: i32, %arg1: i32, %arg2: memref<2x6xi32, #tpu.memory_space<smem>>, %arg3: memref<2x6xi32, #tpu.memory_space<smem>>, %arg4: memref<2x6xi32, #tpu.memory_space<smem>>, %arg5: memref<512x128xbf16, #tpu.memory_space<vmem>>, %arg6: memref<1x256x512xbf16, #tpu.memory_space<vmem>>, %arg7: memref<6x128x128xf32, #tpu.memory_space<vmem>>, %arg8: memref<256x128xf32, #tpu.memory_space<vmem>>, %arg9: memref<256x128xf32, #tpu.memory_space<vmem>>) attributes {dimension_semantics = [#tpu.dimension_semantics<parallel>, #tpu.dimension_semantics<arbitrary>], iteration_bounds = array<i64: 2, 6>, scalar_prefetch = 3 : i64, scratch_operands = 0 : i64, tpu.core_type = #tpu.core_type<tc>, window_params = [{transform_indices = @transform_0, window_bounds = array<i64: 512, 128>}, {transform_indices = @transform_1, window_bounds = array<i64: 1, 256, 512>}, {pipeline_mode = #tpu.pipeline_mode<synchronous>, transform_indices = @transform_2, window_bounds = array<i64: 6, 128, 128>}, {transform_indices = @transform_3, window_bounds = array<i64: 256, 128>}, {transform_indices = @transform_4, window_bounds = array<i64: 256, 128>}]} {
    %c0_i32 = arith.constant 0 : i32
    %0 = arith.cmpi eq, %arg1, %c0_i32 : i32
    %1 = arith.extui %0 : i1 to i32
    %c0_i32_0 = arith.constant 0 : i32
    %2 = arith.cmpi ne, %1, %c0_i32_0 : i32
    scf.if %2 {
      %c0 = arith.constant 0 : index
      %c0_2 = arith.constant 0 : index
      %9 = vector.load %arg8[%c0, %c0_2] : memref<256x128xf32, #tpu.memory_space<vmem>>, vector<256x128xf32>
      %c0_3 = arith.constant 0 : index
      %c0_4 = arith.constant 0 : index
      %10 = vector.load %arg9[%c0_3, %c0_4] : memref<256x128xf32, #tpu.memory_space<vmem>>, vector<256x128xf32>
      tpu.vector_store %arg9[%c0_3, %c0_4], %9 {strides = array<i32>} : memref<256x128xf32, #tpu.memory_space<vmem>>, vector<256x128xf32>,
    } else {
    }
    %3 = arith.index_cast %arg0 : i32 to index
    %4 = arith.index_cast %arg1 : i32 to index
    %5 = memref.load %arg4[%3, %4] : memref<2x6xi32, #tpu.memory_space<smem>>
    %c1_i32 = arith.constant 1 : i32
    %6 = arith.cmpi eq, %5, %c1_i32 : i32
    %7 = arith.extui %6 : i1 to i32
    %c0_i32_1 = arith.constant 0 : i32
    %8 = arith.cmpi ne, %7, %c0_i32_1 : i32
    scf.if %8 {
      %c0 = arith.constant 0 : index
      %c0_2 = arith.constant 0 : index
      %c0_3 = arith.constant 0 : index
      %9 = vector.load %arg6[%c0, %c0_2, %c0_3] : memref<1x256x512xbf16, #tpu.memory_space<vmem>>, vector<1x256x512xbf16>
      %10 = vector.shape_cast %9 : vector<1x256x512xbf16> to vector<256x512xbf16>
      %c0_4 = arith.constant 0 : index
      %c0_5 = arith.constant 0 : index
      %11 = vector.load %arg5[%c0_4, %c0_5] : memref<512x128xbf16, #tpu.memory_space<vmem>>, vector<512x128xbf16>
      %cst = arith.constant dense<0.000000e+00> : vector<256x128xf32>
      %12 = tpu.matmul %10, %11, %cst {dimension_numbers = #tpu.dot_dimension_numbers<[1], [0], [0], [1], [0, 0, 1, 1], [], []>} : vector<256x512xbf16>, vector<512x128xbf16>, vector<256x128xf32> -> vector<256x128xf32>
      %13 = arith.index_cast %arg0 : i32 to index
      %14 = arith.index_cast %arg1 : i32 to index
      %15 = memref.load %arg2[%13, %14] : memref<2x6xi32, #tpu.memory_space<smem>>
      %16 = arith.index_cast %15 : i32 to index
      %c0_6 = arith.constant 0 : index
      %c0_7 = arith.constant 0 : index
      %17 = vector.load %arg7[%16, %c0_6, %c0_7] : memref<6x128x128xf32, #tpu.memory_space<vmem>>, vector<1x128x128xf32>
      %18 = vector.shape_cast %17 : vector<1x128x128xf32> to vector<128x128xf32>
      %c0_8 = arith.constant 0 : index
      %c0_9 = arith.constant 0 : index
      %19 = vector.load %arg9[%c0_8, %c0_9] : memref<256x128xf32, #tpu.memory_space<vmem>>, vector<256x128xf32>
      %cst_10 = arith.constant dense<0.000000e+00> : vector<256x128xf32>
      %20 = tpu.matmul %12, %18, %cst_10 {dimension_numbers = #tpu.dot_dimension_numbers<[1], [0], [0], [1], [0, 0, 1, 1], [], []>} : vector<256x128xf32>, vector<128x128xf32>, vector<256x128xf32> -> vector<256x128xf32>
      %21 = arith.addf %19, %20 : vector<256x128xf32>
      %c0_11 = arith.constant 0 : index
      %c0_12 = arith.constant 0 : index
      %22 = vector.load %arg9[%c0_11, %c0_12] : memref<256x128xf32, #tpu.memory_space<vmem>>, vector<256x128xf32>
      tpu.vector_store %arg9[%c0_11, %c0_12], %21 {strides = array<i32>} : memref<256x128xf32, #tpu.memory_space<vmem>>, vector<256x128xf32>,
    } else {
    }
    return
  }
  func.func @transform_0(%arg0: i32, %arg1: i32, %arg2: memref<2x6xi32, #tpu.memory_space<smem>>, %arg3: memref<2x6xi32, #tpu.memory_space<smem>>, %arg4: memref<2x6xi32, #tpu.memory_space<smem>>) -> (i32, i32) {
    %0 = arith.index_cast %arg0 : i32 to index
    %1 = arith.index_cast %arg1 : i32 to index
    %2 = memref.load %arg3[%0, %1] : memref<2x6xi32, #tpu.memory_space<smem>>
    %c0_i32 = arith.constant 0 : i32
    %c0_i32_0 = arith.constant 0 : i32
    return %2, %c0_i32 : i32, i32
  }
  func.func @transform_1(%arg0: i32, %arg1: i32, %arg2: memref<2x6xi32, #tpu.memory_space<smem>>, %arg3: memref<2x6xi32, #tpu.memory_space<smem>>, %arg4: memref<2x6xi32, #tpu.memory_space<smem>>) -> (i32, i32, i32) {
    %0 = arith.index_cast %arg0 : i32 to index
    %1 = arith.index_cast %arg1 : i32 to index
    %2 = memref.load %arg2[%0, %1] : memref<2x6xi32, #tpu.memory_space<smem>>
    %3 = arith.index_cast %arg0 : i32 to index
    %4 = arith.index_cast %arg1 : i32 to index
    %5 = memref.load %arg3[%3, %4] : memref<2x6xi32, #tpu.memory_space<smem>>
    %c0_i32 = arith.constant 0 : i32
    return %2, %arg0, %5 : i32, i32, i32
  }
  func.func @transform_2(%arg0: i32, %arg1: i32, %arg2: memref<2x6xi32, #tpu.memory_space<smem>>, %arg3: memref<2x6xi32, #tpu.memory_space<smem>>, %arg4: memref<2x6xi32, #tpu.memory_space<smem>>) -> (i32, i32, i32) {
    %c0_i32 = arith.constant 0 : i32
    %c0_i32_0 = arith.constant 0 : i32
    %c0_i32_1 = arith.constant 0 : i32
    %c0_i32_2 = arith.constant 0 : i32
    return %c0_i32, %c0_i32_0, %c0_i32_1 : i32, i32, i32
  }
  func.func @transform_3(%arg0: i32, %arg1: i32, %arg2: memref<2x6xi32, #tpu.memory_space<smem>>, %arg3: memref<2x6xi32, #tpu.memory_space<smem>>, %arg4: memref<2x6xi32, #tpu.memory_space<smem>>) -> (i32, i32) {
    %c0_i32 = arith.constant 0 : i32
    %c0_i32_0 = arith.constant 0 : i32
    return %arg0, %c0_i32 : i32, i32
  }
  func.func @transform_4(%arg0: i32, %arg1: i32, %arg2: memref<2x6xi32, #tpu.memory_space<smem>>, %arg3: memref<2x6xi32, #tpu.memory_space<smem>>, %arg4: memref<2x6xi32, #tpu.memory_space<smem>>) -> (i32, i32) {
    %c0_i32 = arith.constant 0 : i32
    %c0_i32_0 = arith.constant 0 : i32
    return %arg0, %c0_i32 : i32, i32
  }
}

</mosaic_0001>

<llo_original>
// kernel: tpu_custom_call.1
$region0: #{tpu_custom_call.1}
  #allocation0 [shape = 'u32[]', space=smem, size = 0x4, offset = 0x4, fixed_abs, tag = 'smem constant byte address 0x4 - core index']
  #allocation1 [shape = 'u32[144,128]{1,0:T(1,128)}', space=vmem, size = 0x12000, scoped, tag = 'internal scratch']
  #allocation2 [shape = 's32[1]{0}', space=sflag, size = 0x4, scoped, tag = 'scoped memory for tpu_custom_call.1']
  #allocation3 [shape = 'u8[1024]{0}', space=smem, size = 0x400, scoped, tag = 'prefetched SMEM operand 0']
  #allocation4 [shape = 'u8[1024]{0}', space=smem, size = 0x400, scoped, tag = 'prefetched SMEM operand 1']
  #allocation5 [shape = 'u8[1024]{0}', space=smem, size = 0x400, scoped, tag = 'prefetched SMEM operand 2']
  %s0 = inlined_call_operand.hbm [shape: s32[2,6], index: 0, kind: input, shape index: {}]
  %s1 = inlined_call_operand.hbm [shape: s32[2,6], index: 1, kind: input, shape index: {}]
  %s2 = inlined_call_operand.hbm [shape: s32[2,6], index: 2, kind: input, shape index: {}]
  %s3 = inlined_call_operand.hbm [shape: bf16[512,128], index: 3, kind: input, shape index: {}]
  %s4 = inlined_call_operand.hbm [shape: bf16[6,512,512], index: 4, kind: input, shape index: {}]
  %s5 = inlined_call_operand.hbm [shape: f32[6,128,128], index: 5, kind: input, shape index: {}]
  %s6 = inlined_call_operand.hbm [shape: f32[512,128], index: 6, kind: input, shape index: {}]
  %s7 = inlined_call_operand.hbm [shape: f32[512,128], index: 7, kind: output, shape index: {}]
  %s8 = sld [smem:[#allocation0]]
  $region73: #{tpu_custom_call.1} parent=0
    _
  %s10 = ssub.s32 1, %s8
  %s11 = scalar_select 0, %s10, %s8
  %13 = dma.hbm_to_smem %s0, 32, [#allocation3], [#allocation2]
  %15 = dma.hbm_to_smem %s1, 32, [#allocation4], [#allocation2]
  %17 = dma.hbm_to_smem %s2, 32, [#allocation5], [#allocation2]
  %18 = dma.done [#allocation2], 96
  %19 = sfence
  $region1: #{tpu_custom_call.1} parent=0
    #allocation6 [shape = 'u8[262144]{0}', space=vmem, size = 0x40000, scoped, tag = 'input window, operand 3']
    #allocation7 [shape = 's32[2]{0}', space=sflag, size = 0x8, scoped, tag = 'scoped memory for tpu_custom_call.1']
    #allocation8 [shape = 's32[2]{0}', space=sflag, size = 0x8, scoped, tag = 'scoped memory for tpu_custom_call.1']
    #allocation9 [shape = 'u8[524288]{0}', space=vmem, size = 0x80000, scoped, tag = 'input window, operand 4']
    #allocation10 [shape = 's32[2]{0}', space=sflag, size = 0x8, scoped, tag = 'scoped memory for tpu_custom_call.1']
    #allocation11 [shape = 'u8[393216]{0}', space=vmem, size = 0x60000, scoped, tag = 'input window, operand 5, single buffered']
    #allocation12 [shape = 'u8[262144]{0}', space=vmem, size = 0x40000, scoped, tag = 'input window, operand 6']
    #allocation13 [shape = 's32[2]{0}', space=sflag, size = 0x8, scoped, tag = 'scoped memory for tpu_custom_call.1']
    #allocation14 [shape = 'u8[262144]{0}', space=vmem, size = 0x40000, scoped, tag = 'output window, operand 0']
    %20 = vsyncpa [#allocation7], 0
    %s21 = scalar_lea.sflag [#allocation7], 1
    %22 = vsyncpa %s21, 0
    %23 = vsyncpa [#allocation10], 0
    %s24 = scalar_lea.sflag [#allocation10], 1
    %25 = vsyncpa %s24, 0
    %26 = vsyncpa [#allocation13], 0
    %s27 = scalar_lea.sflag [#allocation13], 1
    %28 = vsyncpa %s27, 0
    %29 = vsyncpa [#allocation8], 0
    %s30 = scalar_lea.sflag [#allocation8], 1
    %31 = vsyncpa %s30, 0
    loop: start=0, step=1, limit=14
    $region2: #{tpu_custom_call.1} parent=1 // loop_pre_header
      _
    $region3: #{tpu_custom_call.1} parent=1 // loop_header
      %s33 = sphi 0, %s37
      %p34 = scmp.ge.s32.totalorder %s33, 14
      %s40 = sphi 0, %s52
      %s41 = sphi 0, %s48
      %s42 = sphi 0, %s40
      %s43 = sphi 0, %s41
      %s44 = sphi 0, %s42
      %s45 = sphi 0, %s43
      %s71 = sphi 0, %s73
      %s74 = sphi 0, %s71
      %s75 = sphi 0, %s74
      %s91 = sphi 0, %s75
      %s119 = sphi 0, %s121
      %s122 = sphi 0, %s119
      %s123 = sphi 0, %s122
      %s139 = sphi 0, %s123
      %s143 = sphi 0, %s143
      %s145 = sphi 0, %s143
      %s146 = sphi 0, %s145
      %s160 = sphi 0, %s146
      %s166 = sphi 0, %s168
      %s169 = sphi 0, %s166
      %s170 = sphi 0, %s169
      %s186 = sphi 0, %s170
      %s192 = sphi 0, %s194
      %s195 = sphi 0, %s192
      %s196 = sphi 0, %s195
      %s212 = sphi 0, %s196
    $region4: #{tpu_custom_call.1} parent=1 // loop_header_branch
      %36 = sbr.rel (%p34) target = $region8
    $region5: #{tpu_custom_call.1} parent=1 // loop_body
      %s38 = ssub.s32 %s33, 1
      %s39 = ssub.s32 %s33, 2
      %s46 = sadd.s32 1, %s41
      %p47 = scmp.ge.s32.totalorder %s46, 6
      %s48 = scalar_select %p47, 0, %s46
      %s49 = sadd.s32 1, %s40
      %s50 = scalar_select %p47, %s49, %s40
      %p51 = scmp.ge.s32.totalorder %s50, 2
      %s52 = scalar_select %p51, 0, %s50
      %s53 = sshra.s32 %s41, 7
      %s54 = sand.u32 %s41, 127
      %s55 = sadd.s32 %s53, %s40
      %s56 = smul.u32 %s55, 128
      %s57 = sshra.s32 %s41, 7
      %s58 = sand.u32 %s41, 127
      %s59 = sadd.s32 %s56, %s58
      %s60 = sld [smem:[#allocation4 + %s59]]
      %s61 = sshra.s32 %s48, 7
      %s62 = sand.u32 %s48, 127
      %s63 = sadd.s32 %s61, %s52
      %s64 = smul.u32 %s63, 128
      %s65 = sshra.s32 %s48, 7
      %s66 = sand.u32 %s48, 127
      %s67 = sadd.s32 %s64, %s66
      %s68 = sld [smem:[#allocation4 + %s67]]
      %s69 = ssub.s32 %s60, %s68
      %p70 = scmp.eq.s32.totalorder %s69, 0
      %s72 = sadd.s32 %s71, 1
      %s73 = scalar_select %p70, %s71, %s72
      %p76 = pneg %p70
      %p77 = scmp.eq.s32.totalorder %s33, 11
      %p78 = por %p76, %p77
      %p79 = scmp.ne.s32.totalorder %s71, %s74
      %p80 = scmp.eq.s32.totalorder %s33, 0
      %p81 = por %p79, %p80
      %p82 = scmp.ne.s32.totalorder %s71, %s74
      %p83 = scmp.eq.s32.totalorder %s38, 11
      %p84 = por %p82, %p83
      %p85 = scmp.ne.s32.totalorder %s74, %s75
      %p86 = scmp.eq.s32.totalorder %s38, 0
      %p87 = por %p85, %p86
      %p88 = scmp.ne.s32.totalorder %s74, %s75
      %p89 = scmp.eq.s32.totalorder %s39, 11
      %p90 = por %p88, %p89
      %p92 = scmp.ne.s32.totalorder %s75, %s91
      %p93 = scmp.eq.s32.totalorder %s39, 0
      %p94 = por %p92, %p93
      %s95 = sshra.s32 %s41, 7
      %s96 = sand.u32 %s41, 127
      %s97 = sadd.s32 %s95, %s40
      %s98 = smul.u32 %s97, 128
      %s99 = sshra.s32 %s41, 7
      %s100 = sand.u32 %s41, 127
      %s101 = sadd.s32 %s98, %s100
      %s102 = sld [smem:[#allocation3 + %s101]]
      %s103 = sld [smem:[#allocation4 + %s101]]
      %s104 = sshra.s32 %s48, 7
      %s105 = sand.u32 %s48, 127
      %s106 = sadd.s32 %s104, %s52
      %s107 = smul.u32 %s106, 128
      %s108 = sshra.s32 %s48, 7
      %s109 = sand.u32 %s48, 127
      %s110 = sadd.s32 %s107, %s109
      %s111 = sld [smem:[#allocation3 + %s110]]
      %s112 = sld [smem:[#allocation4 + %s110]]
      %s113 = ssub.s32 %s102, %s111
      %s114 = ssub.s32 %s40, %s52
      %s115 = sor.u32 %s113, %s114
      %s116 = ssub.s32 %s103, %s112
      %s117 = sor.u32 %s115, %s116
      %p118 = scmp.eq.s32.totalorder %s117, 0
      %s120 = sadd.s32 %s119, 1
      %s121 = scalar_select %p118, %s119, %s120
      %p124 = pneg %p118
      %p125 = scmp.eq.s32.totalorder %s33, 11
      %p126 = por %p124, %p125
      %p127 = scmp.ne.s32.totalorder %s119, %s122
      %p128 = scmp.eq.s32.totalorder %s33, 0
      %p129 = por %p127, %p128
      %p130 = scmp.ne.s32.totalorder %s119, %s122
      %p131 = scmp.eq.s32.totalorder %s38, 11
      %p132 = por %p130, %p131
      %p133 = scmp.ne.s32.totalorder %s122, %s123
      %p134 = scmp.eq.s32.totalorder %s38, 0
      %p135 = por %p133, %p134
      %p136 = scmp.ne.s32.totalorder %s122, %s123
      %p137 = scmp.eq.s32.totalorder %s39, 11
      %p138 = por %p136, %p137
      %p140 = scmp.ne.s32.totalorder %s123, %s139
      %p141 = scmp.eq.s32.totalorder %s39, 0
      %p142 = por %p140, %p141
      %s144 = sadd.s32 %s143, 1
      %p147 = scmp.eq.s32.totalorder %s33, 11
      %p148 = scmp.ne.s32.totalorder %s143, %s145
      %p149 = scmp.eq.s32.totalorder %s33, 0
      %p150 = por %p148, %p149
      %p151 = scmp.ne.s32.totalorder %s143, %s145
      %p152 = scmp.eq.s32.totalorder %s38, 11
      %p153 = por %p151, %p152
      %p154 = scmp.ne.s32.totalorder %s145, %s146
      %p155 = scmp.eq.s32.totalorder %s38, 0
      %p156 = por %p154, %p155
      %p157 = scmp.ne.s32.totalorder %s145, %s146
      %p158 = scmp.eq.s32.totalorder %s39, 11
      %p159 = por %p157, %p158
      %p161 = scmp.ne.s32.totalorder %s146, %s160
      %p162 = scmp.eq.s32.totalorder %s39, 0
      %p163 = por %p161, %p162
      %s164 = ssub.s32 %s40, %s52
      %p165 = scmp.eq.s32.totalorder %s164, 0
      %s167 = sadd.s32 %s166, 1
      %s168 = scalar_select %p165, %s166, %s167
      %p171 = pneg %p165
      %p172 = scmp.eq.s32.totalorder %s33, 11
      %p173 = por %p171, %p172
      %p174 = scmp.ne.s32.totalorder %s166, %s169
      %p175 = scmp.eq.s32.totalorder %s33, 0
      %p176 = por %p174, %p175
      %p177 = scmp.ne.s32.totalorder %s166, %s169
      %p178 = scmp.eq.s32.totalorder %s38, 11
      %p179 = por %p177, %p178
      %p180 = scmp.ne.s32.totalorder %s169, %s170
      %p181 = scmp.eq.s32.totalorder %s38, 0
      %p182 = por %p180, %p181
      %p183 = scmp.ne.s32.totalorder %s169, %s170
      %p184 = scmp.eq.s32.totalorder %s39, 11
      %p185 = por %p183, %p184
      %p187 = scmp.ne.s32.totalorder %s170, %s186
      %p188 = scmp.eq.s32.totalorder %s39, 0
      %p189 = por %p187, %p188
      %s190 = ssub.s32 %s40, %s52
      %p191 = scmp.eq.s32.totalorder %s190, 0
      %s193 = sadd.s32 %s192, 1
      %s194 = scalar_select %p191, %s192, %s193
      %p197 = pneg %p191
      %p198 = scmp.eq.s32.totalorder %s33, 11
      %p199 = por %p197, %p198
      %p200 = scmp.ne.s32.totalorder %s192, %s195
      %p201 = scmp.eq.s32.totalorder %s33, 0
      %p202 = por %p200, %p201
      %p203 = scmp.ne.s32.totalorder %s192, %s195
      %p204 = scmp.eq.s32.totalorder %s38, 11
      %p205 = por %p203, %p204
      %p206 = scmp.ne.s32.totalorder %s195, %s196
      %p207 = scmp.eq.s32.totalorder %s38, 0
      %p208 = por %p206, %p207
      %p209 = scmp.ne.s32.totalorder %s195, %s196
      %p210 = scmp.eq.s32.totalorder %s39, 11
      %p211 = por %p209, %p210
      %p213 = scmp.ne.s32.totalorder %s196, %s212
      %p214 = scmp.eq.s32.totalorder %s39, 0
      %p215 = por %p213, %p214
      %p216 = scmp.le.s32.totalorder 1, %s33
      %p217 = scmp.lt.s32.totalorder %s33, 13
      %p218 = pnand %p216, %p217
      %p219 = pneg %p218
      // Predicated region
      $region9: #{tpu_custom_call.1} parent=5 // pred_check
        _
      $region10: #{tpu_custom_call.1} parent=5 // pred_check_branch
        %221 = sbr.rel (%p218) target = $region12
      $region11: #{tpu_custom_call.1} parent=5 // pred_region
        %s222 = ssub.s32 %s33, 1
        // Predicated region
        $region13: #{tpu_custom_call.1} parent=11 // pred_check
          %p223 = pneg %p156
        $region14: #{tpu_custom_call.1} parent=11 // pred_check_branch
          %225 = sbr.rel (%p223) target = $region16
        $region15: #{tpu_custom_call.1} parent=11 // pred_region
          %s227 = ssub.s32 12288, 12288
          %228 = vsyncadd [#allocation10], %s227
          %s229 = sshll.u32 [#allocation11], 4
          %s230 = int_to_ptr.vmem [resolvable:$true] %s229
          %235 = dma.hbm_to_vmem [thread:$0]  %s5, 12288, %s230, [#allocation10], 128, 128, 8
        $region16: #{tpu_custom_call.1} parent=11 // pred_fallthru
          _
      $region12: #{tpu_custom_call.1} parent=5 // pred_fallthru
        _
      %p236 = scmp.lt.s32.totalorder %s33, 12
      // Predicated region
      $region17: #{tpu_custom_call.1} parent=5 // pred_check
        %p237 = pneg %p236
      $region18: #{tpu_custom_call.1} parent=5 // pred_check_branch
        %239 = sbr.rel (%p237) target = $region20
      $region19: #{tpu_custom_call.1} parent=5 // pred_region
        // Predicated region
        $region21: #{tpu_custom_call.1} parent=19 // pred_check
          %p240 = pneg %p81
        $region22: #{tpu_custom_call.1} parent=19 // pred_check_branch
          %242 = sbr.rel (%p240) target = $region24
        $region23: #{tpu_custom_call.1} parent=19 // pred_region
          %s243 = sand.u32 %s71, 1
          %s244 = scalar_lea.sflag [#allocation7], %s243
          %s245 = sand.u32 %s71, 1
          %s246 = smul.addr %s245, 256
          %s247 = scalar_lea.vmem [#allocation6], %s246
          %s248 = sshra.s32 %s41, 7
          %s249 = sand.u32 %s41, 127
          %s250 = sadd.s32 %s248, %s40
          %s251 = smul.u32 %s250, 128
          %s252 = sshra.s32 %s41, 7
          %s253 = sand.u32 %s41, 127
          %s254 = sadd.s32 %s251, %s253
          %s255 = sld [smem:[#allocation4 + %s254]]
          %s256 = smul.u32 64, %s255
          %s258 = ssub.s32 4096, 4096
          %259 = vsyncadd %s244, %s258
          %s260 = smul.addr %s256, 64
          %s261 = scalar_lea.hbm %s3, %s260
          %s262 = sshll.u32 %s247, 4
          %s263 = int_to_ptr.vmem [resolvable:$true] %s262
          %268 = dma.hbm_to_vmem [thread:$0]  %s261, 4096, %s263, %s244, 64, 64, 4
        $region24: #{tpu_custom_call.1} parent=19 // pred_fallthru
          _
        // Predicated region
        $region25: #{tpu_custom_call.1} parent=19 // pred_check
          %p269 = pneg %p129
        $region26: #{tpu_custom_call.1} parent=19 // pred_check_branch
          %271 = sbr.rel (%p269) target = $region28
        $region27: #{tpu_custom_call.1} parent=19 // pred_region
          %s272 = sand.u32 %s33, 1
          %s273 = scalar_lea.sflag [#allocation10], %s272
          %s274 = sand.u32 %s119, 1
          %s275 = smul.addr %s274, 512
          %s276 = scalar_lea.vmem [#allocation9], %s275
          %s277 = sshra.s32 %s41, 7
          %s278 = sand.u32 %s41, 127
          %s279 = sadd.s32 %s277, %s40
          %s280 = smul.u32 %s279, 128
          %s281 = sshra.s32 %s41, 7
          %s282 = sand.u32 %s41, 127
          %s283 = sadd.s32 %s280, %s282
          %s284 = sld [smem:[#allocation3 + %s283]]
          %s285 = sld [smem:[#allocation4 + %s283]]
          %s286 = smul.u32 32, %s40
          %s287 = smul.u32 4, %s285
          %s289 = ssub.s32 8192, 8192
          %290 = vsyncadd %s273, %s289
          %s291 = smul.addr %s286, 4
          %s292 = sadd.s32 %s287, %s291
          %s293 = smul.addr %s284, 256
          %s294 = sadd.s32 %s292, %s293
          %s295 = smul.addr %s294, 64
          %s296 = scalar_lea.hbm %s4, %s295
          %s297 = sshll.u32 %s276, 4
          %s298 = int_to_ptr.vmem [resolvable:$true] %s297
          %303 = dma.hbm_to_vmem [thread:$0]  %s296, 8192, %s298, %s273, 256, 256, 16
        $region28: #{tpu_custom_call.1} parent=19 // pred_fallthru
          _
        // Predicated region
        $region29: #{tpu_custom_call.1} parent=19 // pred_check
          %p304 = pneg %p176
        $region30: #{tpu_custom_call.1} parent=19 // pred_check_branch
          %306 = sbr.rel (%p304) target = $region32
        $region31: #{tpu_custom_call.1} parent=19 // pred_region
          %s307 = sand.u32 %s166, 1
          %s308 = scalar_lea.sflag [#allocation13], %s307
          %s309 = sand.u32 %s166, 1
          %s310 = smul.addr %s309, 256
          %s311 = scalar_lea.vmem [#allocation12], %s310
          %s312 = smul.u32 32, %s40
          %s314 = ssub.s32 4096, 4096
          %315 = vsyncadd %s308, %s314
          %s316 = smul.addr %s312, 128
          %s317 = scalar_lea.hbm %s6, %s316
          %s318 = sshll.u32 %s311, 4
          %s319 = int_to_ptr.vmem [resolvable:$true] %s318
          %324 = dma.hbm_to_vmem [thread:$0]  %s317, 4096, %s319, %s308, 128, 128, 8
        $region32: #{tpu_custom_call.1} parent=19 // pred_fallthru
          _
      $region20: #{tpu_custom_call.1} parent=5 // pred_fallthru
        _
      %p325 = scmp.le.s32.totalorder 1, %s33
      %p326 = scmp.lt.s32.totalorder %s33, 13
      %p327 = pnand %p325, %p326
      %p328 = pneg %p327
      // Predicated region
      $region33: #{tpu_custom_call.1} parent=5 // pred_check
        _
      $region34: #{tpu_custom_call.1} parent=5 // pred_check_branch
        %330 = sbr.rel (%p327) target = $region36
      $region35: #{tpu_custom_call.1} parent=5 // pred_region
        %s331 = ssub.s32 %s33, 1
        %s332 = sand.u32 %s74, 1
        %s333 = scalar_lea.sflag [#allocation7], %s332
        %s334 = sand.u32 %s74, 1
        %s335 = smul.addr %s334, 256
        %s336 = scalar_lea.vmem [#allocation6], %s335
        // Predicated region
        $region37: #{tpu_custom_call.1} parent=35 // pred_check
          %p337 = pneg %p87
        $region38: #{tpu_custom_call.1} parent=35 // pred_check_branch
          %339 = sbr.rel (%p337) target = $region40
        $region39: #{tpu_custom_call.1} parent=35 // pred_region
          %340 = dma.done %s333, 4096
        $region40: #{tpu_custom_call.1} parent=35 // pred_fallthru
          _
        %s341 = sand.u32 %s38, 1
        %s342 = scalar_lea.sflag [#allocation10], %s341
        %s343 = sand.u32 %s122, 1
        %s344 = smul.addr %s343, 512
        %s345 = scalar_lea.vmem [#allocation9], %s344
        // Predicated region
        $region41: #{tpu_custom_call.1} parent=35 // pred_check
          %p346 = pneg %p135
        $region42: #{tpu_custom_call.1} parent=35 // pred_check_branch
          %348 = sbr.rel (%p346) target = $region44
        $region43: #{tpu_custom_call.1} parent=35 // pred_region
          %349 = dma.done %s342, 8192
        $region44: #{tpu_custom_call.1} parent=35 // pred_fallthru
          _
        // Predicated region
        $region45: #{tpu_custom_call.1} parent=35 // pred_check
          %p350 = pneg %p156
        $region46: #{tpu_custom_call.1} parent=35 // pred_check_branch
          %352 = sbr.rel (%p350) target = $region48
        $region47: #{tpu_custom_call.1} parent=35 // pred_region
          %353 = dma.done [#allocation10], 12288
        $region48: #{tpu_custom_call.1} parent=35 // pred_fallthru
          _
        %s354 = sand.u32 %s169, 1
        %s355 = scalar_lea.sflag [#allocation13], %s354
        %s356 = sand.u32 %s169, 1
        %s357 = smul.addr %s356, 256
        %s358 = scalar_lea.vmem [#allocation12], %s357
        // Predicated region
        $region49: #{tpu_custom_call.1} parent=35 // pred_check
          %p359 = pneg %p182
        $region50: #{tpu_custom_call.1} parent=35 // pred_check_branch
          %361 = sbr.rel (%p359) target = $region52
        $region51: #{tpu_custom_call.1} parent=35 // pred_region
          %362 = dma.done %s355, 4096
        $region52: #{tpu_custom_call.1} parent=35 // pred_fallthru
          _
        %s363 = sand.u32 %s74, 1
        %s364 = scalar_lea.sflag [#allocation7], %s363
        %s365 = sand.u32 %s74, 1
        %s366 = smul.addr %s365, 256
        %s367 = scalar_lea.vmem [#allocation6], %s366
        %p368 = pneg %p87
        %p369 = pneg %p84
        %s370 = sand.u32 %s38, 1
        %s371 = scalar_lea.sflag [#allocation10], %s370
        %s372 = sand.u32 %s122, 1
        %s373 = smul.addr %s372, 512
        %s374 = scalar_lea.vmem [#allocation9], %s373
        %p375 = pneg %p135
        %p376 = pneg %p132
        %p377 = pneg %p156
        %p378 = pneg %p153
        %s379 = sand.u32 %s169, 1
        %s380 = scalar_lea.sflag [#allocation13], %s379
        %s381 = sand.u32 %s169, 1
        %s382 = smul.addr %s381, 256
        %s383 = scalar_lea.vmem [#allocation12], %s382
        %p384 = pneg %p182
        %p385 = pneg %p179
        %p386 = pneg %p208
        %p387 = pneg %p205
        %s388 = sand.u32 %s195, 1
        %s389 = scalar_lea.sflag [#allocation8], %s388
        %s390 = sand.u32 %s195, 1
        %s391 = smul.addr %s390, 256
        %s392 = scalar_lea.vmem [#allocation14], %s391
        %s393 = sshra.s32 %s43, 7
        %s394 = sand.u32 %s43, 127
        %s395 = sadd.s32 %s393, %s42
        %s396 = smul.u32 %s395, 128
        %s397 = sshra.s32 %s43, 7
        %s398 = sand.u32 %s43, 127
        %s399 = sadd.s32 %s396, %s398
        %s400 = sld [smem:[#allocation4 + %s399]]
        %s401 = smul.u32 64, %s400
        %s402 = sshra.s32 %s43, 7
        %s403 = sand.u32 %s43, 127
        %s404 = sadd.s32 %s402, %s42
        %s405 = smul.u32 %s404, 128
        %s406 = sshra.s32 %s43, 7
        %s407 = sand.u32 %s43, 127
        %s408 = sadd.s32 %s405, %s407
        %s409 = sld [smem:[#allocation3 + %s408]]
        %s410 = sld [smem:[#allocation4 + %s408]]
        %s411 = smul.u32 32, %s42
        %s412 = smul.u32 4, %s410
        %s413 = smul.u32 32, %s42
        %s414 = smul.u32 32, %s42
        %p416 = scmp.eq.s32.totalorder %s43, 0
        // Predicated region
        $region53: #{tpu_custom_call.1} parent=35 // pred_check
          %p417 = pneg %p416
        $region54: #{tpu_custom_call.1} parent=35 // pred_check_branch
          %419 = sbr.rel (%p417) target = $region56
        $region55: #{tpu_custom_call.1} parent=35 // pred_region
          %v420 = vld [vmem:[%s358] sm:$0xff]
          %v421 = vld [vmem:[%s358 + $0x8] sm:$0xff]
          %v422 = vld [vmem:[%s358 + $0x10] sm:$0xff]
          %v423 = vld [vmem:[%s358 + $0x18] sm:$0xff]
          %v424 = vld [vmem:[%s358 + $0x20] sm:$0xff]
          %v425 = vld [vmem:[%s358 + $0x28] sm:$0xff]
          %v426 = vld [vmem:[%s358 + $0x30] sm:$0xff]
          %v427 = vld [vmem:[%s358 + $0x38] sm:$0xff]
          %v428 = vld [vmem:[%s358 + $0x40] sm:$0xff]
          %v429 = vld [vmem:[%s358 + $0x48] sm:$0xff]
          %v430 = vld [vmem:[%s358 + $0x50] sm:$0xff]
          %v431 = vld [vmem:[%s358 + $0x58] sm:$0xff]
          %v432 = vld [vmem:[%s358 + $0x60] sm:$0xff]
          %v433 = vld [vmem:[%s358 + $0x68] sm:$0xff]
          %v434 = vld [vmem:[%s358 + $0x70] sm:$0xff]
          %v435 = vld [vmem:[%s358 + $0x78] sm:$0xff]
          %v436 = vld [vmem:[%s358 + $0x80] sm:$0xff]
          %v437 = vld [vmem:[%s358 + $0x88] sm:$0xff]
          %v438 = vld [vmem:[%s358 + $0x90] sm:$0xff]
          %v439 = vld [vmem:[%s358 + $0x98] sm:$0xff]
          %v440 = vld [vmem:[%s358 + $0xa0] sm:$0xff]
          %v441 = vld [vmem:[%s358 + $0xa8] sm:$0xff]
          %v442 = vld [vmem:[%s358 + $0xb0] sm:$0xff]
          %v443 = vld [vmem:[%s358 + $0xb8] sm:$0xff]
          %v444 = vld [vmem:[%s358 + $0xc0] sm:$0xff]
          %v445 = vld [vmem:[%s358 + $0xc8] sm:$0xff]
          %v446 = vld [vmem:[%s358 + $0xd0] sm:$0xff]
          %v447 = vld [vmem:[%s358 + $0xd8] sm:$0xff]
          %v448 = vld [vmem:[%s358 + $0xe0] sm:$0xff]
          %v449 = vld [vmem:[%s358 + $0xe8] sm:$0xff]
          %v450 = vld [vmem:[%s358 + $0xf0] sm:$0xff]
          %v451 = vld [vmem:[%s358 + $0xf8] sm:$0xff]
          %452 = vst [vmem:[%s392] sm:$0xff] %v420
          %453 = vst [vmem:[%s392 + $0x8] sm:$0xff] %v421
          %454 = vst [vmem:[%s392 + $0x10] sm:$0xff] %v422
          %455 = vst [vmem:[%s392 + $0x18] sm:$0xff] %v423
          %456 = vst [vmem:[%s392 + $0x20] sm:$0xff] %v424
          %457 = vst [vmem:[%s392 + $0x28] sm:$0xff] %v425
          %458 = vst [vmem:[%s392 + $0x30] sm:$0xff] %v426
          %459 = vst [vmem:[%s392 + $0x38] sm:$0xff] %v427
          %460 = vst [vmem:[%s392 + $0x40] sm:$0xff] %v428
          %461 = vst [vmem:[%s392 + $0x48] sm:$0xff] %v429
          %462 = vst [vmem:[%s392 + $0x50] sm:$0xff] %v430
          %463 = vst [vmem:[%s392 + $0x58] sm:$0xff] %v431
          %464 = vst [vmem:[%s392 + $0x60] sm:$0xff] %v432
          %465 = vst [vmem:[%s392 + $0x68] sm:$0xff] %v433
          %466 = vst [vmem:[%s392 + $0x70] sm:$0xff] %v434
          %467 = vst [vmem:[%s392 + $0x78] sm:$0xff] %v435
          %468 = vst [vmem:[%s392 + $0x80] sm:$0xff] %v436
          %469 = vst [vmem:[%s392 + $0x88] sm:$0xff] %v437
          %470 = vst [vmem:[%s392 + $0x90] sm:$0xff] %v438
          %471 = vst [vmem:[%s392 + $0x98] sm:$0xff] %v439
          %472 = vst [vmem:[%s392 + $0xa0] sm:$0xff] %v440
          %473 = vst [vmem:[%s392 + $0xa8] sm:$0xff] %v441
          %474 = vst [vmem:[%s392 + $0xb0] sm:$0xff] %v442
          %475 = vst [vmem:[%s392 + $0xb8] sm:$0xff] %v443
          %476 = vst [vmem:[%s392 + $0xc0] sm:$0xff] %v444
          %477 = vst [vmem:[%s392 + $0xc8] sm:$0xff] %v445
          %478 = vst [vmem:[%s392 + $0xd0] sm:$0xff] %v446
          %479 = vst [vmem:[%s392 + $0xd8] sm:$0xff] %v447
          %480 = vst [vmem:[%s392 + $0xe0] sm:$0xff] %v448
          %481 = vst [vmem:[%s392 + $0xe8] sm:$0xff] %v449
          %482 = vst [vmem:[%s392 + $0xf0] sm:$0xff] %v450
          %483 = vst [vmem:[%s392 + $0xf8] sm:$0xff] %v451
        $region56: #{tpu_custom_call.1} parent=35 // pred_fallthru
          _
        %s484 = sshra.s32 %s43, 7
        %s485 = sand.u32 %s43, 127
        %s486 = sadd.s32 %s484, %s42
        %s487 = smul.u32 %s486, 128
        %s488 = sshra.s32 %s43, 7
        %s489 = sand.u32 %s43, 127
        %s490 = sadd.s32 %s487, %s489
        %s491 = sld [smem:[#allocation5 + %s490]]
        %p492 = scmp.eq.s32.totalorder %s491, 1
        // Predicated region
        $region57: #{tpu_custom_call.1} parent=35 // pred_check
          %p493 = pneg %p492
        $region58: #{tpu_custom_call.1} parent=35 // pred_check_branch
          %495 = sbr.rel (%p493) target = $region60
        $region59: #{tpu_custom_call.1} parent=35 // pred_region
          %v496 = vld [vmem:[%s345] sm:$0xff]
          %v497 = vld [vmem:[%s345 + $0x8] sm:$0xff]
          %v498 = vld [vmem:[%s345 + $0x10] sm:$0xff]
          %v499 = vld [vmem:[%s345 + $0x18] sm:$0xff]
          %v500 = vld [vmem:[%s345 + $0x20] sm:$0xff]
          %v501 = vld [vmem:[%s345 + $0x28] sm:$0xff]
          %v502 = vld [vmem:[%s345 + $0x30] sm:$0xff]
          %v503 = vld [vmem:[%s345 + $0x38] sm:$0xff]
          %v504 = vld [vmem:[%s345 + $0x40] sm:$0xff]
          %v505 = vld [vmem:[%s345 + $0x48] sm:$0xff]
          %v506 = vld [vmem:[%s345 + $0x50] sm:$0xff]
          %v507 = vld [vmem:[%s345 + $0x58] sm:$0xff]
          %v508 = vld [vmem:[%s345 + $0x60] sm:$0xff]
          %v509 = vld [vmem:[%s345 + $0x68] sm:$0xff]
          %v510 = vld [vmem:[%s345 + $0x70] sm:$0xff]
          %v511 = vld [vmem:[%s345 + $0x78] sm:$0xff]
          %v512 = vld [vmem:[%s345 + $0x80] sm:$0xff]
          %v513 = vld [vmem:[%s345 + $0x88] sm:$0xff]
          %v514 = vld [vmem:[%s345 + $0x90] sm:$0xff]
          %v515 = vld [vmem:[%s345 + $0x98] sm:$0xff]
          %v516 = vld [vmem:[%s345 + $0xa0] sm:$0xff]
          %v517 = vld [vmem:[%s345 + $0xa8] sm:$0xff]
          %v518 = vld [vmem:[%s345 + $0xb0] sm:$0xff]
          %v519 = vld [vmem:[%s345 + $0xb8] sm:$0xff]
          %v520 = vld [vmem:[%s345 + $0xc0] sm:$0xff]
          %v521 = vld [vmem:[%s345 + $0xc8] sm:$0xff]
          %v522 = vld [vmem:[%s345 + $0xd0] sm:$0xff]
          %v523 = vld [vmem:[%s345 + $0xd8] sm:$0xff]
          %v524 = vld [vmem:[%s345 + $0xe0] sm:$0xff]
          %v525 = vld [vmem:[%s345 + $0xe8] sm:$0xff]
          %v526 = vld [vmem:[%s345 + $0xf0] sm:$0xff]
          %v527 = vld [vmem:[%s345 + $0xf8] sm:$0xff]
          %v528 = vld [vmem:[%s345 + $0x100] sm:$0xff]
          %v529 = vld [vmem:[%s345 + $0x108] sm:$0xff]
          %v530 = vld [vmem:[%s345 + $0x110] sm:$0xff]
          %v531 = vld [vmem:[%s345 + $0x118] sm:$0xff]
          %v532 = vld [vmem:[%s345 + $0x120] sm:$0xff]
          %v533 = vld [vmem:[%s345 + $0x128] sm:$0xff]
          %v534 = vld [vmem:[%s345 + $0x130] sm:$0xff]
          %v535 = vld [vmem:[%s345 + $0x138] sm:$0xff]
          %v536 = vld [vmem:[%s345 + $0x140] sm:$0xff]
          %v537 = vld [vmem:[%s345 + $0x148] sm:$0xff]
          %v538 = vld [vmem:[%s345 + $0x150] sm:$0xff]
          %v539 = vld [vmem:[%s345 + $0x158] sm:$0xff]
          %v540 = vld [vmem:[%s345 + $0x160] sm:$0xff]
          %v541 = vld [vmem:[%s345 + $0x168] sm:$0xff]
          %v542 = vld [vmem:[%s345 + $0x170] sm:$0xff]
          %v543 = vld [vmem:[%s345 + $0x178] sm:$0xff]
          %v544 = vld [vmem:[%s345 + $0x180] sm:$0xff]
          %v545 = vld [vmem:[%s345 + $0x188] sm:$0xff]
          %v546 = vld [vmem:[%s345 + $0x190] sm:$0xff]
          %v547 = vld [vmem:[%s345 + $0x198] sm:$0xff]
          %v548 = vld [vmem:[%s345 + $0x1a0] sm:$0xff]
          %v549 = vld [vmem:[%s345 + $0x1a8] sm:$0xff]
          %v550 = vld [vmem:[%s345 + $0x1b0] sm:$0xff]
          %v551 = vld [vmem:[%s345 + $0x1b8] sm:$0xff]
          %v552 = vld [vmem:[%s345 + $0x1c0] sm:$0xff]
          %v553 = vld [vmem:[%s345 + $0x1c8] sm:$0xff]
          %v554 = vld [vmem:[%s345 + $0x1d0] sm:$0xff]
          %v555 = vld [vmem:[%s345 + $0x1d8] sm:$0xff]
          %v556 = vld [vmem:[%s345 + $0x1e0] sm:$0xff]
          %v557 = vld [vmem:[%s345 + $0x1e8] sm:$0xff]
          %v558 = vld [vmem:[%s345 + $0x1f0] sm:$0xff]
          %v559 = vld [vmem:[%s345 + $0x1f8] sm:$0xff]
          %v560 = vld [vmem:[%s336] sm:$0xf]
          %v561 = vld [vmem:[%s336 + $0x4] sm:$0xf]
          %v562 = vld [vmem:[%s336 + $0x8] sm:$0xf]
          %v563 = vld [vmem:[%s336 + $0xc] sm:$0xf]
          %v564 = vld [vmem:[%s336 + $0x10] sm:$0xf]
          %v565 = vld [vmem:[%s336 + $0x14] sm:$0xf]
          %v566 = vld [vmem:[%s336 + $0x18] sm:$0xf]
          %v567 = vld [vmem:[%s336 + $0x1c] sm:$0xf]
          %v568 = vld [vmem:[%s336 + $0x20] sm:$0xf]
          %v569 = vld [vmem:[%s336 + $0x24] sm:$0xf]
          %v570 = vld [vmem:[%s336 + $0x28] sm:$0xf]
          %v571 = vld [vmem:[%s336 + $0x2c] sm:$0xf]
          %v572 = vld [vmem:[%s336 + $0x30] sm:$0xf]
          %v573 = vld [vmem:[%s336 + $0x34] sm:$0xf]
          %v574 = vld [vmem:[%s336 + $0x38] sm:$0xf]
          %v575 = vld [vmem:[%s336 + $0x3c] sm:$0xf]
          %v576 = vld [vmem:[%s336 + $0x40] sm:$0xf]
          %v577 = vld [vmem:[%s336 + $0x44] sm:$0xf]
          %v578 = vld [vmem:[%s336 + $0x48] sm:$0xf]
          %v579 = vld [vmem:[%s336 + $0x4c] sm:$0xf]
          %v580 = vld [vmem:[%s336 + $0x50] sm:$0xf]
          %v581 = vld [vmem:[%s336 + $0x54] sm:$0xf]
          %v582 = vld [vmem:[%s336 + $0x58] sm:$0xf]
          %v583 = vld [vmem:[%s336 + $0x5c] sm:$0xf]
          %v584 = vld [vmem:[%s336 + $0x60] sm:$0xf]
          %v585 = vld [vmem:[%s336 + $0x64] sm:$0xf]
          %v586 = vld [vmem:[%s336 + $0x68] sm:$0xf]
          %v587 = vld [vmem:[%s336 + $0x6c] sm:$0xf]
          %v588 = vld [vmem:[%s336 + $0x70] sm:$0xf]
          %v589 = vld [vmem:[%s336 + $0x74] sm:$0xf]
          %v590 = vld [vmem:[%s336 + $0x78] sm:$0xf]
          %v591 = vld [vmem:[%s336 + $0x7c] sm:$0xf]
          %v592 = vld [vmem:[%s336 + $0x80] sm:$0xf]
          %v593 = vld [vmem:[%s336 + $0x84] sm:$0xf]
          %v594 = vld [vmem:[%s336 + $0x88] sm:$0xf]
          %v595 = vld [vmem:[%s336 + $0x8c] sm:$0xf]
          %v596 = vld [vmem:[%s336 + $0x90] sm:$0xf]
          %v597 = vld [vmem:[%s336 + $0x94] sm:$0xf]
          %v598 = vld [vmem:[%s336 + $0x98] sm:$0xf]
          %v599 = vld [vmem:[%s336 + $0x9c] sm:$0xf]
          %v600 = vld [vmem:[%s336 + $0xa0] sm:$0xf]
          %v601 = vld [vmem:[%s336 + $0xa4] sm:$0xf]
          %v602 = vld [vmem:[%s336 + $0xa8] sm:$0xf]
          %v603 = vld [vmem:[%s336 + $0xac] sm:$0xf]
          %v604 = vld [vmem:[%s336 + $0xb0] sm:$0xf]
          %v605 = vld [vmem:[%s336 + $0xb4] sm:$0xf]
          %v606 = vld [vmem:[%s336 + $0xb8] sm:$0xf]
          %v607 = vld [vmem:[%s336 + $0xbc] sm:$0xf]
          %v608 = vld [vmem:[%s336 + $0xc0] sm:$0xf]
          %v609 = vld [vmem:[%s336 + $0xc4] sm:$0xf]
          %v610 = vld [vmem:[%s336 + $0xc8] sm:$0xf]
          %v611 = vld [vmem:[%s336 + $0xcc] sm:$0xf]
          %v612 = vld [vmem:[%s336 + $0xd0] sm:$0xf]
          %v613 = vld [vmem:[%s336 + $0xd4] sm:$0xf]
          %v614 = vld [vmem:[%s336 + $0xd8] sm:$0xf]
          %v615 = vld [vmem:[%s336 + $0xdc] sm:$0xf]
          %v616 = vld [vmem:[%s336 + $0xe0] sm:$0xf]
          %v617 = vld [vmem:[%s336 + $0xe4] sm:$0xf]
          %v618 = vld [vmem:[%s336 + $0xe8] sm:$0xf]
          %v619 = vld [vmem:[%s336 + $0xec] sm:$0xf]
          %v620 = vld [vmem:[%s336 + $0xf0] sm:$0xf]
          %v621 = vld [vmem:[%s336 + $0xf4] sm:$0xf]
          %v622 = vld [vmem:[%s336 + $0xf8] sm:$0xf]
          %v623 = vld [vmem:[%s336 + $0xfc] sm:$0xf]
          %v688 = vunpack.c.l.b16 %v496
          %v689 = vunpack.c.h.b16 %v496
          %v690 = vunpack.c.l.b16 %v497
          %v691 = vunpack.c.h.b16 %v497
          %v692 = vunpack.c.l.b16 %v498
          %v693 = vunpack.c.h.b16 %v498
          %v694 = vunpack.c.l.b16 %v499
          %v695 = vunpack.c.h.b16 %v499
          %v696 = vunpack.c.l.b16 %v500
          %v697 = vunpack.c.h.b16 %v500
          %v698 = vunpack.c.l.b16 %v501
          %v699 = vunpack.c.h.b16 %v501
          %v700 = vunpack.c.l.b16 %v502
          %v701 = vunpack.c.h.b16 %v502
          %v702 = vunpack.c.l.b16 %v503
          %v703 = vunpack.c.h.b16 %v503
          %v704 = vunpack.c.l.b16 %v504
          %v705 = vunpack.c.h.b16 %v504
          %v706 = vunpack.c.l.b16 %v505
          %v707 = vunpack.c.h.b16 %v505
          %v708 = vunpack.c.l.b16 %v506
          %v709 = vunpack.c.h.b16 %v506
          %v710 = vunpack.c.l.b16 %v507
          %v711 = vunpack.c.h.b16 %v507
          %v712 = vunpack.c.l.b16 %v508
          %v713 = vunpack.c.h.b16 %v508
          %v714 = vunpack.c.l.b16 %v509
          %v715 = vunpack.c.h.b16 %v509
          %v716 = vunpack.c.l.b16 %v510
          %v717 = vunpack.c.h.b16 %v510
          %v718 = vunpack.c.l.b16 %v511
          %v719 = vunpack.c.h.b16 %v511
          %v720 = vunpack.c.l.b16 %v512
          %v721 = vunpack.c.h.b16 %v512
          %v722 = vunpack.c.l.b16 %v513
          %v723 = vunpack.c.h.b16 %v513
          %v724 = vunpack.c.l.b16 %v514
          %v725 = vunpack.c.h.b16 %v514
          %v726 = vunpack.c.l.b16 %v515
          %v727 = vunpack.c.h.b16 %v515
          %v728 = vunpack.c.l.b16 %v516
          %v729 = vunpack.c.h.b16 %v516
          %v730 = vunpack.c.l.b16 %v517
          %v731 = vunpack.c.h.b16 %v517
          %v732 = vunpack.c.l.b16 %v518
          %v733 = vunpack.c.h.b16 %v518
          %v734 = vunpack.c.l.b16 %v519
          %v735 = vunpack.c.h.b16 %v519
          %v736 = vunpack.c.l.b16 %v520
          %v737 = vunpack.c.h.b16 %v520
          %v738 = vunpack.c.l.b16 %v521
          %v739 = vunpack.c.h.b16 %v521
          %v740 = vunpack.c.l.b16 %v522
          %v741 = vunpack.c.h.b16 %v522
          %v742 = vunpack.c.l.b16 %v523
          %v743 = vunpack.c.h.b16 %v523
          %v744 = vunpack.c.l.b16 %v524
          %v745 = vunpack.c.h.b16 %v524
          %v746 = vunpack.c.l.b16 %v525
          %v747 = vunpack.c.h.b16 %v525
          %v748 = vunpack.c.l.b16 %v526
          %v749 = vunpack.c.h.b16 %v526
          %v750 = vunpack.c.l.b16 %v527
          %v751 = vunpack.c.h.b16 %v527
          %v752 = vunpack.c.l.b16 %v528
          %v753 = vunpack.c.h.b16 %v528
          %v754 = vunpack.c.l.b16 %v529
          %v755 = vunpack.c.h.b16 %v529
          %v756 = vunpack.c.l.b16 %v530
          %v757 = vunpack.c.h.b16 %v530
          %v758 = vunpack.c.l.b16 %v531
          %v759 = vunpack.c.h.b16 %v531
          %v760 = vunpack.c.l.b16 %v532
          %v761 = vunpack.c.h.b16 %v532
          %v762 = vunpack.c.l.b16 %v533
          %v763 = vunpack.c.h.b16 %v533
          %v764 = vunpack.c.l.b16 %v534
          %v765 = vunpack.c.h.b16 %v534
          %v766 = vunpack.c.l.b16 %v535
          %v767 = vunpack.c.h.b16 %v535
          %v768 = vunpack.c.l.b16 %v536
          %v769 = vunpack.c.h.b16 %v536
          %v770 = vunpack.c.l.b16 %v537
          %v771 = vunpack.c.h.b16 %v537
          %v772 = vunpack.c.l.b16 %v538
          %v773 = vunpack.c.h.b16 %v538
          %v774 = vunpack.c.l.b16 %v539
          %v775 = vunpack.c.h.b16 %v539
          %v776 = vunpack.c.l.b16 %v540
          %v777 = vunpack.c.h.b16 %v540
          %v778 = vunpack.c.l.b16 %v541
          %v779 = vunpack.c.h.b16 %v541
          %v780 = vunpack.c.l.b16 %v542
          %v781 = vunpack.c.h.b16 %v542
          %v782 = vunpack.c.l.b16 %v543
          %v783 = vunpack.c.h.b16 %v543
          %v784 = vunpack.c.l.b16 %v544
          %v785 = vunpack.c.h.b16 %v544
          %v786 = vunpack.c.l.b16 %v545
          %v787 = vunpack.c.h.b16 %v545
          %v788 = vunpack.c.l.b16 %v546
          %v789 = vunpack.c.h.b16 %v546
          %v790 = vunpack.c.l.b16 %v547
          %v791 = vunpack.c.h.b16 %v547
          %v792 = vunpack.c.l.b16 %v548
          %v793 = vunpack.c.h.b16 %v548
          %v794 = vunpack.c.l.b16 %v549
          %v795 = vunpack.c.h.b16 %v549
          %v796 = vunpack.c.l.b16 %v550
          %v797 = vunpack.c.h.b16 %v550
          %v798 = vunpack.c.l.b16 %v551
          %v799 = vunpack.c.h.b16 %v551
          %v800 = vunpack.c.l.b16 %v552
          %v801 = vunpack.c.h.b16 %v552
          %v802 = vunpack.c.l.b16 %v553
          %v803 = vunpack.c.h.b16 %v553
          %v804 = vunpack.c.l.b16 %v554
          %v805 = vunpack.c.h.b16 %v554
          %v806 = vunpack.c.l.b16 %v555
          %v807 = vunpack.c.h.b16 %v555
          %v808 = vunpack.c.l.b16 %v556
          %v809 = vunpack.c.h.b16 %v556
          %v810 = vunpack.c.l.b16 %v557
          %v811 = vunpack.c.h.b16 %v557
          %v812 = vunpack.c.l.b16 %v558
          %v813 = vunpack.c.h.b16 %v558
          %v814 = vunpack.c.l.b16 %v559
          %v815 = vunpack.c.h.b16 %v559
          %v816 = vpack.c.b16 %v692, %v688
          %v817 = vpack.c.b16 %v693, %v689
          %v818 = vpack.c.b16 %v694, %v690
          %v819 = vpack.c.b16 %v695, %v691
          %v820 = vpack.c.b16 %v700, %v696
          %v821 = vpack.c.b16 %v701, %v697
          %v822 = vpack.c.b16 %v702, %v698
          %v823 = vpack.c.b16 %v703, %v699
          %v824 = vpack.c.b16 %v708, %v704
          %v825 = vpack.c.b16 %v709, %v705
          %v826 = vpack.c.b16 %v710, %v706
          %v827 = vpack.c.b16 %v711, %v707
          %v828 = vpack.c.b16 %v716, %v712
          %v829 = vpack.c.b16 %v717, %v713
          %v830 = vpack.c.b16 %v718, %v714
          %v831 = vpack.c.b16 %v719, %v715
          %v832 = vpack.c.b16 %v724, %v720
          %v833 = vpack.c.b16 %v725, %v721
          %v834 = vpack.c.b16 %v726, %v722
          %v835 = vpack.c.b16 %v727, %v723
          %v836 = vpack.c.b16 %v732, %v728
          %v837 = vpack.c.b16 %v733, %v729
          %v838 = vpack.c.b16 %v734, %v730
          %v839 = vpack.c.b16 %v735, %v731
          %v840 = vpack.c.b16 %v740, %v736
          %v841 = vpack.c.b16 %v741, %v737
          %v842 = vpack.c.b16 %v742, %v738
          %v843 = vpack.c.b16 %v743, %v739
          %v844 = vpack.c.b16 %v748, %v744
          %v845 = vpack.c.b16 %v749, %v745
          %v846 = vpack.c.b16 %v750, %v746
          %v847 = vpack.c.b16 %v751, %v747
          %v848 = vpack.c.b16 %v756, %v752
          %v849 = vpack.c.b16 %v757, %v753
          %v850 = vpack.c.b16 %v758, %v754
          %v851 = vpack.c.b16 %v759, %v755
          %v852 = vpack.c.b16 %v764, %v760
          %v853 = vpack.c.b16 %v765, %v761
          %v854 = vpack.c.b16 %v766, %v762
          %v855 = vpack.c.b16 %v767, %v763
          %v856 = vpack.c.b16 %v772, %v768
          %v857 = vpack.c.b16 %v773, %v769
          %v858 = vpack.c.b16 %v774, %v770
          %v859 = vpack.c.b16 %v775, %v771
          %v860 = vpack.c.b16 %v780, %v776
          %v861 = vpack.c.b16 %v781, %v777
          %v862 = vpack.c.b16 %v782, %v778
          %v863 = vpack.c.b16 %v783, %v779
          %v864 = vpack.c.b16 %v788, %v784
          %v865 = vpack.c.b16 %v789, %v785
          %v866 = vpack.c.b16 %v790, %v786
          %v867 = vpack.c.b16 %v791, %v787
          %v868 = vpack.c.b16 %v796, %v792
          %v869 = vpack.c.b16 %v797, %v793
          %v870 = vpack.c.b16 %v798, %v794
          %v871 = vpack.c.b16 %v799, %v795
          %v872 = vpack.c.b16 %v804, %v800
          %v873 = vpack.c.b16 %v805, %v801
          %v874 = vpack.c.b16 %v806, %v802
          %v875 = vpack.c.b16 %v807, %v803
          %v876 = vpack.c.b16 %v812, %v808
          %v877 = vpack.c.b16 %v813, %v809
          %v878 = vpack.c.b16 %v814, %v810
          %v879 = vpack.c.b16 %v815, %v811
          %v1008 = vunpack.c.l.b16 %v560
          %v1009 = vunpack.c.l.b16 %v561
          %v1010 = vunpack.c.l.b16 %v562
          %v1011 = vunpack.c.l.b16 %v563
          %v1012 = vunpack.c.l.b16 %v564
          %v1013 = vunpack.c.l.b16 %v565
          %v1014 = vunpack.c.l.b16 %v566
          %v1015 = vunpack.c.l.b16 %v567
          %v1016 = vunpack.c.l.b16 %v568
          %v1017 = vunpack.c.l.b16 %v569
          %v1018 = vunpack.c.l.b16 %v570
          %v1019 = vunpack.c.l.b16 %v571
          %v1020 = vunpack.c.l.b16 %v572
          %v1021 = vunpack.c.l.b16 %v573
          %v1022 = vunpack.c.l.b16 %v574
          %v1023 = vunpack.c.l.b16 %v575
          %v1024 = vunpack.c.l.b16 %v576
          %v1025 = vunpack.c.l.b16 %v577
          %v1026 = vunpack.c.l.b16 %v578
          %v1027 = vunpack.c.l.b16 %v579
          %v1028 = vunpack.c.l.b16 %v580
          %v1029 = vunpack.c.l.b16 %v581
          %v1030 = vunpack.c.l.b16 %v582
          %v1031 = vunpack.c.l.b16 %v583
          %v1032 = vunpack.c.l.b16 %v584
          %v1033 = vunpack.c.l.b16 %v585
          %v1034 = vunpack.c.l.b16 %v586
          %v1035 = vunpack.c.l.b16 %v587
          %v1036 = vunpack.c.l.b16 %v588
          %v1037 = vunpack.c.l.b16 %v589
          %v1038 = vunpack.c.l.b16 %v590
          %v1039 = vunpack.c.l.b16 %v591
          %v1040 = vunpack.c.l.b16 %v592
          %v1041 = vunpack.c.l.b16 %v593
          %v1042 = vunpack.c.l.b16 %v594
          %v1043 = vunpack.c.l.b16 %v595
          %v1044 = vunpack.c.l.b16 %v596
          %v1045 = vunpack.c.l.b16 %v597
          %v1046 = vunpack.c.l.b16 %v598
          %v1047 = vunpack.c.l.b16 %v599
          %v1048 = vunpack.c.l.b16 %v600
          %v1049 = vunpack.c.l.b16 %v601
          %v1050 = vunpack.c.l.b16 %v602
          %v1051 = vunpack.c.l.b16 %v603
          %v1052 = vunpack.c.l.b16 %v604
          %v1053 = vunpack.c.l.b16 %v605
          %v1054 = vunpack.c.l.b16 %v606
          %v1055 = vunpack.c.l.b16 %v607
          %v1056 = vunpack.c.l.b16 %v608
          %v1057 = vunpack.c.l.b16 %v609
          %v1058 = vunpack.c.l.b16 %v610
          %v1059 = vunpack.c.l.b16 %v611
          %v1060 = vunpack.c.l.b16 %v612
          %v1061 = vunpack.c.l.b16 %v613
          %v1062 = vunpack.c.l.b16 %v614
          %v1063 = vunpack.c.l.b16 %v615
          %v1064 = vunpack.c.l.b16 %v616
          %v1065 = vunpack.c.l.b16 %v617
          %v1066 = vunpack.c.l.b16 %v618
          %v1067 = vunpack.c.l.b16 %v619
          %v1068 = vunpack.c.l.b16 %v620
          %v1069 = vunpack.c.l.b16 %v621
          %v1070 = vunpack.c.l.b16 %v622
          %v1071 = vunpack.c.l.b16 %v623
          %v1072 = vpack.c.b16 %v1009, %v1008
          %v1073 = vpack.c.b16 %v1011, %v1010
          %v1074 = vpack.c.b16 %v1013, %v1012
          %v1075 = vpack.c.b16 %v1015, %v1014
          %v1076 = vpack.c.b16 %v1017, %v1016
          %v1077 = vpack.c.b16 %v1019, %v1018
          %v1078 = vpack.c.b16 %v1021, %v1020
          %v1079 = vpack.c.b16 %v1023, %v1022
          %v1080 = vpack.c.b16 %v1025, %v1024
          %v1081 = vpack.c.b16 %v1027, %v1026
          %v1082 = vpack.c.b16 %v1029, %v1028
          %v1083 = vpack.c.b16 %v1031, %v1030
          %v1084 = vpack.c.b16 %v1033, %v1032
          %v1085 = vpack.c.b16 %v1035, %v1034
          %v1086 = vpack.c.b16 %v1037, %v1036
          %v1087 = vpack.c.b16 %v1039, %v1038
          %v1088 = vpack.c.b16 %v1041, %v1040
          %v1089 = vpack.c.b16 %v1043, %v1042
          %v1090 = vpack.c.b16 %v1045, %v1044
          %v1091 = vpack.c.b16 %v1047, %v1046
          %v1092 = vpack.c.b16 %v1049, %v1048
          %v1093 = vpack.c.b16 %v1051, %v1050
          %v1094 = vpack.c.b16 %v1053, %v1052
          %v1095 = vpack.c.b16 %v1055, %v1054
          %v1096 = vpack.c.b16 %v1057, %v1056
          %v1097 = vpack.c.b16 %v1059, %v1058
          %v1098 = vpack.c.b16 %v1061, %v1060
          %v1099 = vpack.c.b16 %v1063, %v1062
          %v1100 = vpack.c.b16 %v1065, %v1064
          %v1101 = vpack.c.b16 %v1067, %v1066
          %v1102 = vpack.c.b16 %v1069, %v1068
          %v1103 = vpack.c.b16 %v1071, %v1070
          %1136 = vmatprep.subr.bf16.mxu0 0
          %1137 = vmatpush1.bf16.msra.mxu0 %v1072
          %1138 = vmatprep.subr.bf16.mxu0 0
          %1139 = vmatpush1.bf16.msra.mxu0 %v1073
          %1140 = vmatprep.subr.bf16.mxu0 0
          %1141 = vmatpush1.bf16.msra.mxu0 %v1074
          %1142 = vmatprep.subr.bf16.mxu0 0
          %1143 = vmatpush1.bf16.msra.mxu0 %v1075
          %1144 = vmatprep.subr.bf16.mxu0 0
          %1145 = vmatpush1.bf16.msra.mxu0 %v1076
          %1146 = vmatprep.subr.bf16.mxu0 0
          %1147 = vmatpush1.bf16.msra.mxu0 %v1077
          %1148 = vmatprep.subr.bf16.mxu0 0
          %1149 = vmatpush1.bf16.msra.mxu0 %v1078
          %1150 = vmatprep.subr.bf16.mxu0 0
          %1151 = vmatpush1.bf16.msra.mxu0 %v1079
          %1152 = vmatprep.subr.bf16.mxu0 0
          %1153 = vmatpush1.bf16.msra.mxu0 %v1080
          %1154 = vmatprep.subr.bf16.mxu0 0
          %1155 = vmatpush1.bf16.msra.mxu0 %v1081
          %1156 = vmatprep.subr.bf16.mxu0 0
          %1157 = vmatpush1.bf16.msra.mxu0 %v1082
          %1158 = vmatprep.subr.bf16.mxu0 0
          %1159 = vmatpush1.bf16.msra.mxu0 %v1083
          %1160 = vmatprep.subr.bf16.mxu0 0
          %1161 = vmatpush1.bf16.msra.mxu0 %v1084
          %1162 = vmatprep.subr.bf16.mxu0 0
          %1163 = vmatpush1.bf16.msra.mxu0 %v1085
          %1164 = vmatprep.subr.bf16.mxu0 0
          %1165 = vmatpush1.bf16.msra.mxu0 %v1086
          %1166 = vmatprep.subr.bf16.mxu0 0
          %1167 = vmatpush1.bf16.msra.mxu0 %v1087
          %1168 = vmatprep.mubr.bf16.mxu0 %v817
          %1169 = vmatmul.mubr.bf16.gmra.mrb[0].mxu0 %v816
          %v1170 = vpop.f32.mrb[0].mxu0
          %v1171 = vadd.f32 0.0, %v1170
          %v1172 = vpop.f32.mrb[0].mxu0
          %v1173 = vpop.f32.mrb[0].mxu0
          %v1174 = vadd.f32 0.0, %v1173
          %v1175 = vpop.f32.mrb[0].mxu0
          %1176 = vmatprep.mubr.bf16.mxu0 %v821
          %1177 = vmatmul.mubr.bf16.gmra.mrb[0].mxu0 %v820
          %v1178 = vpop.f32.mrb[0].mxu0
          %v1179 = vadd.f32 0.0, %v1178
          %v1180 = vpop.f32.mrb[0].mxu0
          %v1181 = vpop.f32.mrb[0].mxu0
          %v1182 = vadd.f32 0.0, %v1181
          %v1183 = vpop.f32.mrb[0].mxu0
          %1184 = vmatprep.mubr.bf16.mxu0 %v825
          %1185 = vmatmul.mubr.bf16.gmra.mrb[0].mxu0 %v824
          %v1186 = vpop.f32.mrb[0].mxu0
          %v1187 = vadd.f32 0.0, %v1186
          %v1188 = vpop.f32.mrb[0].mxu0
          %v1189 = vpop.f32.mrb[0].mxu0
          %v1190 = vadd.f32 0.0, %v1189
          %v1191 = vpop.f32.mrb[0].mxu0
          %1192 = vmatprep.mubr.bf16.mxu0 %v829
          %1193 = vmatmul.mubr.bf16.gmra.mrb[0].mxu0 %v828
          %v1194 = vpop.f32.mrb[0].mxu0
          %v1195 = vadd.f32 0.0, %v1194
          %v1196 = vpop.f32.mrb[0].mxu0
          %v1197 = vpop.f32.mrb[0].mxu0
          %v1198 = vadd.f32 0.0, %v1197
          %v1199 = vpop.f32.mrb[0].mxu0
          %1200 = vmatprep.mubr.bf16.mxu0 %v833
          %1201 = vmatmul.mubr.bf16.gmra.mrb[0].mxu0 %v832
          %v1202 = vpop.f32.mrb[0].mxu0
          %v1203 = vadd.f32 0.0, %v1202
          %v1204 = vpop.f32.mrb[0].mxu0
          %v1205 = vpop.f32.mrb[0].mxu0
          %v1206 = vadd.f32 0.0, %v1205
          %v1207 = vpop.f32.mrb[0].mxu0
          %1208 = vmatprep.mubr.bf16.mxu0 %v837
          %1209 = vmatmul.mubr.bf16.gmra.mrb[0].mxu0 %v836
          %v1210 = vpop.f32.mrb[0].mxu0
          %v1211 = vadd.f32 0.0, %v1210
          %v1212 = vpop.f32.mrb[0].mxu0
          %v1213 = vpop.f32.mrb[0].mxu0
          %v1214 = vadd.f32 0.0, %v1213
          %v1215 = vpop.f32.mrb[0].mxu0
          %1216 = vmatprep.mubr.bf16.mxu0 %v841
          %1217 = vmatmul.mubr.bf16.gmra.mrb[0].mxu0 %v840
          %v1218 = vpop.f32.mrb[0].mxu0
          %v1219 = vadd.f32 0.0, %v1218
          %v1220 = vpop.f32.mrb[0].mxu0
          %v1221 = vpop.f32.mrb[0].mxu0
          %v1222 = vadd.f32 0.0, %v1221
          %v1223 = vpop.f32.mrb[0].mxu0
          %1224 = vmatprep.mubr.bf16.mxu0 %v845
          %1225 = vmatmul.mubr.bf16.gmra.mrb[0].mxu0 %v844
          %v1226 = vpop.f32.mrb[0].mxu0
          %v1227 = vadd.f32 0.0, %v1226
          %v1228 = vpop.f32.mrb[0].mxu0
          %v1229 = vpop.f32.mrb[0].mxu0
          %v1230 = vadd.f32 0.0, %v1229
          %v1231 = vpop.f32.mrb[0].mxu0
          %1232 = vmatprep.mubr.bf16.mxu0 %v849
          %1233 = vmatmul.mubr.bf16.gmra.mrb[0].mxu0 %v848
          %v1234 = vpop.f32.mrb[0].mxu0
          %v1235 = vadd.f32 0.0, %v1234
          %v1236 = vpop.f32.mrb[0].mxu0
          %v1237 = vpop.f32.mrb[0].mxu0
          %v1238 = vadd.f32 0.0, %v1237
          %v1239 = vpop.f32.mrb[0].mxu0
          %1240 = vmatprep.mubr.bf16.mxu0 %v853
          %1241 = vmatmul.mubr.bf16.gmra.mrb[0].mxu0 %v852
          %v1242 = vpop.f32.mrb[0].mxu0
          %v1243 = vadd.f32 0.0, %v1242
          %v1244 = vpop.f32.mrb[0].mxu0
          %v1245 = vpop.f32.mrb[0].mxu0
          %v1246 = vadd.f32 0.0, %v1245
          %v1247 = vpop.f32.mrb[0].mxu0
          %1248 = vmatprep.mubr.bf16.mxu0 %v857
          %1249 = vmatmul.mubr.bf16.gmra.mrb[0].mxu0 %v856
          %v1250 = vpop.f32.mrb[0].mxu0
          %v1251 = vadd.f32 0.0, %v1250
          %v1252 = vpop.f32.mrb[0].mxu0
          %v1253 = vpop.f32.mrb[0].mxu0
          %v1254 = vadd.f32 0.0, %v1253
          %v1255 = vpop.f32.mrb[0].mxu0
          %1256 = vmatprep.mubr.bf16.mxu0 %v861
          %1257 = vmatmul.mubr.bf16.gmra.mrb[0].mxu0 %v860
          %v1258 = vpop.f32.mrb[0].mxu0
          %v1259 = vadd.f32 0.0, %v1258
          %v1260 = vpop.f32.mrb[0].mxu0
          %v1261 = vpop.f32.mrb[0].mxu0
          %v1262 = vadd.f32 0.0, %v1261
          %v1263 = vpop.f32.mrb[0].mxu0
          %1264 = vmatprep.mubr.bf16.mxu0 %v865
          %1265 = vmatmul.mubr.bf16.gmra.mrb[0].mxu0 %v864
          %v1266 = vpop.f32.mrb[0].mxu0
          %v1267 = vadd.f32 0.0, %v1266
          %v1268 = vpop.f32.mrb[0].mxu0
          %v1269 = vpop.f32.mrb[0].mxu0
          %v1270 = vadd.f32 0.0, %v1269
          %v1271 = vpop.f32.mrb[0].mxu0
          %1272 = vmatprep.mubr.bf16.mxu0 %v869
          %1273 = vmatmul.mubr.bf16.gmra.mrb[0].mxu0 %v868
          %v1274 = vpop.f32.mrb[0].mxu0
          %v1275 = vadd.f32 0.0, %v1274
          %v1276 = vpop.f32.mrb[0].mxu0
          %v1277 = vpop.f32.mrb[0].mxu0
          %v1278 = vadd.f32 0.0, %v1277
          %v1279 = vpop.f32.mrb[0].mxu0
          %1280 = vmatprep.mubr.bf16.mxu0 %v873
          %1281 = vmatmul.mubr.bf16.gmra.mrb[0].mxu0 %v872
          %v1282 = vpop.f32.mrb[0].mxu0
          %v1283 = vadd.f32 0.0, %v1282
          %v1284 = vpop.f32.mrb[0].mxu0
          %v1285 = vpop.f32.mrb[0].mxu0
          %v1286 = vadd.f32 0.0, %v1285
          %v1287 = vpop.f32.mrb[0].mxu0
          %1288 = vmatprep.mubr.bf16.mxu0 %v877
          %1289 = vmatmul.mubr.bf16.gmra.mrb[0].mxu0 %v876
          %v1290 = vpop.f32.mrb[0].mxu0
          %v1291 = vadd.f32 0.0, %v1290
          %v1292 = vpop.f32.mrb[0].mxu0
          %v1293 = vpop.f32.mrb[0].mxu0
          %v1294 = vadd.f32 0.0, %v1293
          %v1295 = vpop.f32.mrb[0].mxu0
          %1296 = vdwg.mxu0
          %1297 = vmatprep.subr.bf16.mxu0 0
          %1298 = vmatpush1.bf16.msra.mxu0 %v1088
          %1299 = vmatprep.subr.bf16.mxu0 0
          %1300 = vmatpush1.bf16.msra.mxu0 %v1089
          %1301 = vmatprep.subr.bf16.mxu0 0
          %1302 = vmatpush1.bf16.msra.mxu0 %v1090
          %1303 = vmatprep.subr.bf16.mxu0 0
          %1304 = vmatpush1.bf16.msra.mxu0 %v1091
          %1305 = vmatprep.subr.bf16.mxu0 0
          %1306 = vmatpush1.bf16.msra.mxu0 %v1092
          %1307 = vmatprep.subr.bf16.mxu0 0
          %1308 = vmatpush1.bf16.msra.mxu0 %v1093
          %1309 = vmatprep.subr.bf16.mxu0 0
          %1310 = vmatpush1.bf16.msra.mxu0 %v1094
          %1311 = vmatprep.subr.bf16.mxu0 0
          %1312 = vmatpush1.bf16.msra.mxu0 %v1095
          %1313 = vmatprep.subr.bf16.mxu0 0
          %1314 = vmatpush1.bf16.msra.mxu0 %v1096
          %1315 = vmatprep.subr.bf16.mxu0 0
          %1316 = vmatpush1.bf16.msra.mxu0 %v1097
          %1317 = vmatprep.subr.bf16.mxu0 0
          %1318 = vmatpush1.bf16.msra.mxu0 %v1098
          %1319 = vmatprep.subr.bf16.mxu0 0
          %1320 = vmatpush1.bf16.msra.mxu0 %v1099
          %1321 = vmatprep.subr.bf16.mxu0 0
          %1322 = vmatpush1.bf16.msra.mxu0 %v1100
          %1323 = vmatprep.subr.bf16.mxu0 0
          %1324 = vmatpush1.bf16.msra.mxu0 %v1101
          %1325 = vmatprep.subr.bf16.mxu0 0
          %1326 = vmatpush1.bf16.msra.mxu0 %v1102
          %1327 = vmatprep.subr.bf16.mxu0 0
          %1328 = vmatpush1.bf16.msra.mxu0 %v1103
          %1329 = vmatprep.mubr.bf16.mxu0 %v819
          %1330 = vmatmul.mubr.bf16.gmra.mrb[0].mxu0 %v818
          %v1331 = vpop.f32.mrb[0].mxu0
          %v1332 = vadd.f32 %v1171, %v1331
          %v1333 = vpop.f32.mrb[0].mxu0
          %v1334 = vpop.f32.mrb[0].mxu0
          %v1335 = vadd.f32 %v1174, %v1334
          %v1336 = vpop.f32.mrb[0].mxu0
          %1337 = vmatprep.mubr.bf16.mxu0 %v823
          %1338 = vmatmul.mubr.bf16.gmra.mrb[0].mxu0 %v822
          %v1339 = vpop.f32.mrb[0].mxu0
          %v1340 = vadd.f32 %v1179, %v1339
          %v1341 = vpop.f32.mrb[0].mxu0
          %v1342 = vpop.f32.mrb[0].mxu0
          %v1343 = vadd.f32 %v1182, %v1342
          %v1344 = vpop.f32.mrb[0].mxu0
          %1345 = vmatprep.mubr.bf16.mxu0 %v827
          %1346 = vmatmul.mubr.bf16.gmra.mrb[0].mxu0 %v826
          %v1347 = vpop.f32.mrb[0].mxu0
          %v1348 = vadd.f32 %v1187, %v1347
          %v1349 = vpop.f32.mrb[0].mxu0
          %v1350 = vpop.f32.mrb[0].mxu0
          %v1351 = vadd.f32 %v1190, %v1350
          %v1352 = vpop.f32.mrb[0].mxu0
          %1353 = vmatprep.mubr.bf16.mxu0 %v831
          %1354 = vmatmul.mubr.bf16.gmra.mrb[0].mxu0 %v830
          %v1355 = vpop.f32.mrb[0].mxu0
          %v1356 = vadd.f32 %v1195, %v1355
          %v1357 = vpop.f32.mrb[0].mxu0
          %v1358 = vpop.f32.mrb[0].mxu0
          %v1359 = vadd.f32 %v1198, %v1358
          %v1360 = vpop.f32.mrb[0].mxu0
          %1361 = vmatprep.mubr.bf16.mxu0 %v835
          %1362 = vmatmul.mubr.bf16.gmra.mrb[0].mxu0 %v834
          %v1363 = vpop.f32.mrb[0].mxu0
          %v1364 = vadd.f32 %v1203, %v1363
          %v1365 = vpop.f32.mrb[0].mxu0
          %v1366 = vpop.f32.mrb[0].mxu0
          %v1367 = vadd.f32 %v1206, %v1366
          %v1368 = vpop.f32.mrb[0].mxu0
          %1369 = vmatprep.mubr.bf16.mxu0 %v839
          %1370 = vmatmul.mubr.bf16.gmra.mrb[0].mxu0 %v838
          %v1371 = vpop.f32.mrb[0].mxu0
          %v1372 = vadd.f32 %v1211, %v1371
          %v1373 = vpop.f32.mrb[0].mxu0
          %v1374 = vpop.f32.mrb[0].mxu0
          %v1375 = vadd.f32 %v1214, %v1374
          %v1376 = vpop.f32.mrb[0].mxu0
          %1377 = vmatprep.mubr.bf16.mxu0 %v843
          %1378 = vmatmul.mubr.bf16.gmra.mrb[0].mxu0 %v842
          %v1379 = vpop.f32.mrb[0].mxu0
          %v1380 = vadd.f32 %v1219, %v1379
          %v1381 = vpop.f32.mrb[0].mxu0
          %v1382 = vpop.f32.mrb[0].mxu0
          %v1383 = vadd.f32 %v1222, %v1382
          %v1384 = vpop.f32.mrb[0].mxu0
          %1385 = vmatprep.mubr.bf16.mxu0 %v847
          %1386 = vmatmul.mubr.bf16.gmra.mrb[0].mxu0 %v846
          %v1387 = vpop.f32.mrb[0].mxu0
          %v1388 = vadd.f32 %v1227, %v1387
          %v1389 = vpop.f32.mrb[0].mxu0
          %v1390 = vpop.f32.mrb[0].mxu0
          %v1391 = vadd.f32 %v1230, %v1390
          %v1392 = vpop.f32.mrb[0].mxu0
          %1393 = vmatprep.mubr.bf16.mxu0 %v851
          %1394 = vmatmul.mubr.bf16.gmra.mrb[0].mxu0 %v850
          %v1395 = vpop.f32.mrb[0].mxu0
          %v1396 = vadd.f32 %v1235, %v1395
          %v1397 = vpop.f32.mrb[0].mxu0
          %v1398 = vpop.f32.mrb[0].mxu0
          %v1399 = vadd.f32 %v1238, %v1398
          %v1400 = vpop.f32.mrb[0].mxu0
          %1401 = vmatprep.mubr.bf16.mxu0 %v855
          %1402 = vmatmul.mubr.bf16.gmra.mrb[0].mxu0 %v854
          %v1403 = vpop.f32.mrb[0].mxu0
          %v1404 = vadd.f32 %v1243, %v1403
          %v1405 = vpop.f32.mrb[0].mxu0
          %v1406 = vpop.f32.mrb[0].mxu0
          %v1407 = vadd.f32 %v1246, %v1406
          %v1408 = vpop.f32.mrb[0].mxu0
          %1409 = vmatprep.mubr.bf16.mxu0 %v859
          %1410 = vmatmul.mubr.bf16.gmra.mrb[0].mxu0 %v858
          %v1411 = vpop.f32.mrb[0].mxu0
          %v1412 = vadd.f32 %v1251, %v1411
          %v1413 = vpop.f32.mrb[0].mxu0
          %v1414 = vpop.f32.mrb[0].mxu0
          %v1415 = vadd.f32 %v1254, %v1414
          %v1416 = vpop.f32.mrb[0].mxu0
          %1417 = vmatprep.mubr.bf16.mxu0 %v863
          %1418 = vmatmul.mubr.bf16.gmra.mrb[0].mxu0 %v862
          %v1419 = vpop.f32.mrb[0].mxu0
          %v1420 = vadd.f32 %v1259, %v1419
          %v1421 = vpop.f32.mrb[0].mxu0
          %v1422 = vpop.f32.mrb[0].mxu0
          %v1423 = vadd.f32 %v1262, %v1422
          %v1424 = vpop.f32.mrb[0].mxu0
          %1425 = vmatprep.mubr.bf16.mxu0 %v867
          %1426 = vmatmul.mubr.bf16.gmra.mrb[0].mxu0 %v866
          %v1427 = vpop.f32.mrb[0].mxu0
          %v1428 = vadd.f32 %v1267, %v1427
          %v1429 = vpop.f32.mrb[0].mxu0
          %v1430 = vpop.f32.mrb[0].mxu0
          %v1431 = vadd.f32 %v1270, %v1430
          %v1432 = vpop.f32.mrb[0].mxu0
          %1433 = vmatprep.mubr.bf16.mxu0 %v871
          %1434 = vmatmul.mubr.bf16.gmra.mrb[0].mxu0 %v870
          %v1435 = vpop.f32.mrb[0].mxu0
          %v1436 = vadd.f32 %v1275, %v1435
          %v1437 = vpop.f32.mrb[0].mxu0
          %v1438 = vpop.f32.mrb[0].mxu0
          %v1439 = vadd.f32 %v1278, %v1438
          %v1440 = vpop.f32.mrb[0].mxu0
          %1441 = vmatprep.mubr.bf16.mxu0 %v875
          %1442 = vmatmul.mubr.bf16.gmra.mrb[0].mxu0 %v874
          %v1443 = vpop.f32.mrb[0].mxu0
          %v1444 = vadd.f32 %v1283, %v1443
          %v1445 = vpop.f32.mrb[0].mxu0
          %v1446 = vpop.f32.mrb[0].mxu0
          %v1447 = vadd.f32 %v1286, %v1446
          %v1448 = vpop.f32.mrb[0].mxu0
          %1449 = vmatprep.mubr.bf16.mxu0 %v879
          %1450 = vmatmul.mubr.bf16.gmra.mrb[0].mxu0 %v878
          %v1451 = vpop.f32.mrb[0].mxu0
          %v1452 = vadd.f32 %v1291, %v1451
          %v1453 = vpop.f32.mrb[0].mxu0
          %v1454 = vpop.f32.mrb[0].mxu0
          %v1455 = vadd.f32 %v1294, %v1454
          %v1456 = vpop.f32.mrb[0].mxu0
          %1457 = vdwg.mxu0
          %s1458 = sld [smem:[#allocation3 + %s490]]
          %s1459 = smul.u32 %s1458, 128
          %s1460 = scalar_lea.vmem [#allocation11], %s1459
          %v1461 = vld [vmem:[%s1460] sm:$0xff]
          %v1462 = vld [vmem:[%s1460 + $0x8] sm:$0xff]
          %v1463 = vld [vmem:[%s1460 + $0x10] sm:$0xff]
          %v1464 = vld [vmem:[%s1460 + $0x18] sm:$0xff]
          %v1465 = vld [vmem:[%s1460 + $0x20] sm:$0xff]
          %v1466 = vld [vmem:[%s1460 + $0x28] sm:$0xff]
          %v1467 = vld [vmem:[%s1460 + $0x30] sm:$0xff]
          %v1468 = vld [vmem:[%s1460 + $0x38] sm:$0xff]
          %v1469 = vld [vmem:[%s1460 + $0x40] sm:$0xff]
          %v1470 = vld [vmem:[%s1460 + $0x48] sm:$0xff]
          %v1471 = vld [vmem:[%s1460 + $0x50] sm:$0xff]
          %v1472 = vld [vmem:[%s1460 + $0x58] sm:$0xff]
          %v1473 = vld [vmem:[%s1460 + $0x60] sm:$0xff]
          %v1474 = vld [vmem:[%s1460 + $0x68] sm:$0xff]
          %v1475 = vld [vmem:[%s1460 + $0x70] sm:$0xff]
          %v1476 = vld [vmem:[%s1460 + $0x78] sm:$0xff]
          %v1477 = vld [vmem:[%s392] sm:$0xff]
          %v1478 = vld [vmem:[%s392 + $0x8] sm:$0xff]
          %v1479 = vld [vmem:[%s392 + $0x10] sm:$0xff]
          %v1480 = vld [vmem:[%s392 + $0x18] sm:$0xff]
          %v1481 = vld [vmem:[%s392 + $0x20] sm:$0xff]
          %v1482 = vld [vmem:[%s392 + $0x28] sm:$0xff]
          %v1483 = vld [vmem:[%s392 + $0x30] sm:$0xff]
          %v1484 = vld [vmem:[%s392 + $0x38] sm:$0xff]
          %v1485 = vld [vmem:[%s392 + $0x40] sm:$0xff]
          %v1486 = vld [vmem:[%s392 + $0x48] sm:$0xff]
          %v1487 = vld [vmem:[%s392 + $0x50] sm:$0xff]
          %v1488 = vld [vmem:[%s392 + $0x58] sm:$0xff]
          %v1489 = vld [vmem:[%s392 + $0x60] sm:$0xff]
          %v1490 = vld [vmem:[%s392 + $0x68] sm:$0xff]
          %v1491 = vld [vmem:[%s392 + $0x70] sm:$0xff]
          %v1492 = vld [vmem:[%s392 + $0x78] sm:$0xff]
          %v1493 = vld [vmem:[%s392 + $0x80] sm:$0xff]
          %v1494 = vld [vmem:[%s392 + $0x88] sm:$0xff]
          %v1495 = vld [vmem:[%s392 + $0x90] sm:$0xff]
          %v1496 = vld [vmem:[%s392 + $0x98] sm:$0xff]
          %v1497 = vld [vmem:[%s392 + $0xa0] sm:$0xff]
          %v1498 = vld [vmem:[%s392 + $0xa8] sm:$0xff]
          %v1499 = vld [vmem:[%s392 + $0xb0] sm:$0xff]
          %v1500 = vld [vmem:[%s392 + $0xb8] sm:$0xff]
          %v1501 = vld [vmem:[%s392 + $0xc0] sm:$0xff]
          %v1502 = vld [vmem:[%s392 + $0xc8] sm:$0xff]
          %v1503 = vld [vmem:[%s392 + $0xd0] sm:$0xff]
          %v1504 = vld [vmem:[%s392 + $0xd8] sm:$0xff]
          %v1505 = vld [vmem:[%s392 + $0xe0] sm:$0xff]
          %v1506 = vld [vmem:[%s392 + $0xe8] sm:$0xff]
          %v1507 = vld [vmem:[%s392 + $0xf0] sm:$0xff]
          %v1508 = vld [vmem:[%s392 + $0xf8] sm:$0xff]
          %1509 = vmatprep.subr.mxu0 0.0
          %1510 = vmatpush1.msra.mxu0 %v1461
          %1511 = vmatprep.subr.mxu0 0.0
          %1512 = vmatpush1.msra.mxu0 %v1462
          %1513 = vmatprep.subr.mxu0 0.0
          %1514 = vmatpush1.msra.mxu0 %v1463
          %1515 = vmatprep.subr.mxu0 0.0
          %1516 = vmatpush1.msra.mxu0 %v1464
          %1517 = vmatprep.subr.mxu0 0.0
          %1518 = vmatpush1.msra.mxu0 %v1465
          %1519 = vmatprep.subr.mxu0 0.0
          %1520 = vmatpush1.msra.mxu0 %v1466
          %1521 = vmatprep.subr.mxu0 0.0
          %1522 = vmatpush1.msra.mxu0 %v1467
          %1523 = vmatprep.subr.mxu0 0.0
          %1524 = vmatpush1.msra.mxu0 %v1468
          %1525 = vmatprep.subr.mxu0 0.0
          %1526 = vmatpush1.msra.mxu0 %v1469
          %1527 = vmatprep.subr.mxu0 0.0
          %1528 = vmatpush1.msra.mxu0 %v1470
          %1529 = vmatprep.subr.mxu0 0.0
          %1530 = vmatpush1.msra.mxu0 %v1471
          %1531 = vmatprep.subr.mxu0 0.0
          %1532 = vmatpush1.msra.mxu0 %v1472
          %1533 = vmatprep.subr.mxu0 0.0
          %1534 = vmatpush1.msra.mxu0 %v1473
          %1535 = vmatprep.subr.mxu0 0.0
          %1536 = vmatpush1.msra.mxu0 %v1474
          %1537 = vmatprep.subr.mxu0 0.0
          %1538 = vmatpush1.msra.mxu0 %v1475
          %1539 = vmatprep.subr.mxu0 0.0
          %1540 = vmatpush1.msra.mxu0 %v1476
          %1541 = vmatprep.subr.mxu0 0.0
          %1542 = vmatpush1.msra.mxu0 0.0
          %1543 = vmatprep.subr.mxu0 0.0
          %1544 = vmatpush1.msra.mxu0 0.0
          %1545 = vmatprep.subr.mxu0 0.0
          %1546 = vmatpush1.msra.mxu0 0.0
          %1547 = vmatprep.subr.mxu0 0.0
          %1548 = vmatpush1.msra.mxu0 0.0
          %1549 = vmatprep.subr.mxu0 0.0
          %1550 = vmatpush1.msra.mxu0 0.0
          %1551 = vmatprep.subr.mxu0 0.0
          %1552 = vmatpush1.msra.mxu0 0.0
          %1553 = vmatprep.subr.mxu0 0.0
          %1554 = vmatpush1.msra.mxu0 0.0
          %1555 = vmatprep.subr.mxu0 0.0
          %1556 = vmatpush1.msra.mxu0 0.0
          %1557 = vmatprep.subr.mxu0 0.0
          %1558 = vmatpush1.msra.mxu0 0.0
          %1559 = vmatprep.subr.mxu0 0.0
          %1560 = vmatpush1.msra.mxu0 0.0
          %1561 = vmatprep.subr.mxu0 0.0
          %1562 = vmatpush1.msra.mxu0 0.0
          %1563 = vmatprep.subr.mxu0 0.0
          %1564 = vmatpush1.msra.mxu0 0.0
          %1565 = vmatprep.subr.mxu0 0.0
          %1566 = vmatpush1.msra.mxu0 0.0
          %1567 = vmatprep.subr.mxu0 0.0
          %1568 = vmatpush1.msra.mxu0 0.0
          %1569 = vmatprep.subr.mxu0 0.0
          %1570 = vmatpush1.msra.mxu0 0.0
          %1571 = vmatprep.subr.mxu0 0.0
          %1572 = vmatpush1.msra.mxu0 0.0
          %1573 = vmatprep.mubr.f32.mxu0 0.0
          %1574 = vmatmul.mubr.f32.gmra.mrb[0].mxu0 %v1332
          %v1575 = vpop.f32.mrb[0].mxu0
          %v1576 = vadd.f32 0.0, %v1575
          %v1577 = vpop.f32.mrb[0].mxu0
          %1578 = vmatprep.mubr.f32.mxu0 0.0
          %1579 = vmatmul.mubr.f32.gmra.mrb[0].mxu0 %v1335
          %v1580 = vpop.f32.mrb[0].mxu0
          %v1581 = vadd.f32 0.0, %v1580
          %v1582 = vpop.f32.mrb[0].mxu0
          %1583 = vmatprep.mubr.f32.mxu0 0.0
          %1584 = vmatmul.mubr.f32.gmra.mrb[0].mxu0 %v1340
          %v1585 = vpop.f32.mrb[0].mxu0
          %v1586 = vadd.f32 0.0, %v1585
          %v1587 = vpop.f32.mrb[0].mxu0
          %1588 = vmatprep.mubr.f32.mxu0 0.0
          %1589 = vmatmul.mubr.f32.gmra.mrb[0].mxu0 %v1343
          %v1590 = vpop.f32.mrb[0].mxu0
          %v1591 = vadd.f32 0.0, %v1590
          %v1592 = vpop.f32.mrb[0].mxu0
          %1593 = vmatprep.mubr.f32.mxu0 0.0
          %1594 = vmatmul.mubr.f32.gmra.mrb[0].mxu0 %v1348
          %v1595 = vpop.f32.mrb[0].mxu0
          %v1596 = vadd.f32 0.0, %v1595
          %v1597 = vpop.f32.mrb[0].mxu0
          %1598 = vmatprep.mubr.f32.mxu0 0.0
          %1599 = vmatmul.mubr.f32.gmra.mrb[0].mxu0 %v1351
          %v1600 = vpop.f32.mrb[0].mxu0
          %v1601 = vadd.f32 0.0, %v1600
          %v1602 = vpop.f32.mrb[0].mxu0
          %1603 = vmatprep.mubr.f32.mxu0 0.0
          %1604 = vmatmul.mubr.f32.gmra.mrb[0].mxu0 %v1356
          %v1605 = vpop.f32.mrb[0].mxu0
          %v1606 = vadd.f32 0.0, %v1605
          %v1607 = vpop.f32.mrb[0].mxu0
          %1608 = vmatprep.mubr.f32.mxu0 0.0
          %1609 = vmatmul.mubr.f32.gmra.mrb[0].mxu0 %v1359
          %v1610 = vpop.f32.mrb[0].mxu0
          %v1611 = vadd.f32 0.0, %v1610
          %v1612 = vpop.f32.mrb[0].mxu0
          %1613 = vmatprep.mubr.f32.mxu0 0.0
          %1614 = vmatmul.mubr.f32.gmra.mrb[0].mxu0 %v1364
          %v1615 = vpop.f32.mrb[0].mxu0
          %v1616 = vadd.f32 0.0, %v1615
          %v1617 = vpop.f32.mrb[0].mxu0
          %1618 = vmatprep.mubr.f32.mxu0 0.0
          %1619 = vmatmul.mubr.f32.gmra.mrb[0].mxu0 %v1367
          %v1620 = vpop.f32.mrb[0].mxu0
          %v1621 = vadd.f32 0.0, %v1620
          %v1622 = vpop.f32.mrb[0].mxu0
          %1623 = vmatprep.mubr.f32.mxu0 0.0
          %1624 = vmatmul.mubr.f32.gmra.mrb[0].mxu0 %v1372
          %v1625 = vpop.f32.mrb[0].mxu0
          %v1626 = vadd.f32 0.0, %v1625
          %v1627 = vpop.f32.mrb[0].mxu0
          %1628 = vmatprep.mubr.f32.mxu0 0.0
          %1629 = vmatmul.mubr.f32.gmra.mrb[0].mxu0 %v1375
          %v1630 = vpop.f32.mrb[0].mxu0
          %v1631 = vadd.f32 0.0, %v1630
          %v1632 = vpop.f32.mrb[0].mxu0
          %1633 = vmatprep.mubr.f32.mxu0 0.0
          %1634 = vmatmul.mubr.f32.gmra.mrb[0].mxu0 %v1380
          %v1635 = vpop.f32.mrb[0].mxu0
          %v1636 = vadd.f32 0.0, %v1635
          %v1637 = vpop.f32.mrb[0].mxu0
          %1638 = vmatprep.mubr.f32.mxu0 0.0
          %1639 = vmatmul.mubr.f32.gmra.mrb[0].mxu0 %v1383
          %v1640 = vpop.f32.mrb[0].mxu0
          %v1641 = vadd.f32 0.0, %v1640
          %v1642 = vpop.f32.mrb[0].mxu0
          %1643 = vmatprep.mubr.f32.mxu0 0.0
          %1644 = vmatmul.mubr.f32.gmra.mrb[0].mxu0 %v1388
          %v1645 = vpop.f32.mrb[0].mxu0
          %v1646 = vadd.f32 0.0, %v1645
          %v1647 = vpop.f32.mrb[0].mxu0
          %1648 = vmatprep.mubr.f32.mxu0 0.0
          %1649 = vmatmul.mubr.f32.gmra.mrb[0].mxu0 %v1391
          %v1650 = vpop.f32.mrb[0].mxu0
          %v1651 = vadd.f32 0.0, %v1650
          %v1652 = vpop.f32.mrb[0].mxu0
          %1653 = vmatprep.mubr.f32.mxu0 0.0
          %1654 = vmatmul.mubr.f32.gmra.mrb[0].mxu0 %v1396
          %v1655 = vpop.f32.mrb[0].mxu0
          %v1656 = vadd.f32 0.0, %v1655
          %v1657 = vpop.f32.mrb[0].mxu0
          %1658 = vmatprep.mubr.f32.mxu0 0.0
          %1659 = vmatmul.mubr.f32.gmra.mrb[0].mxu0 %v1399
          %v1660 = vpop.f32.mrb[0].mxu0
          %v1661 = vadd.f32 0.0, %v1660
          %v1662 = vpop.f32.mrb[0].mxu0
          %1663 = vmatprep.mubr.f32.mxu0 0.0
          %1664 = vmatmul.mubr.f32.gmra.mrb[0].mxu0 %v1404
          %v1665 = vpop.f32.mrb[0].mxu0
          %v1666 = vadd.f32 0.0, %v1665
          %v1667 = vpop.f32.mrb[0].mxu0
          %1668 = vmatprep.mubr.f32.mxu0 0.0
          %1669 = vmatmul.mubr.f32.gmra.mrb[0].mxu0 %v1407
          %v1670 = vpop.f32.mrb[0].mxu0
          %v1671 = vadd.f32 0.0, %v1670
          %v1672 = vpop.f32.mrb[0].mxu0
          %1673 = vmatprep.mubr.f32.mxu0 0.0
          %1674 = vmatmul.mubr.f32.gmra.mrb[0].mxu0 %v1412
          %v1675 = vpop.f32.mrb[0].mxu0
          %v1676 = vadd.f32 0.0, %v1675
          %v1677 = vpop.f32.mrb[0].mxu0
          %1678 = vmatprep.mubr.f32.mxu0 0.0
          %1679 = vmatmul.mubr.f32.gmra.mrb[0].mxu0 %v1415
          %v1680 = vpop.f32.mrb[0].mxu0
          %v1681 = vadd.f32 0.0, %v1680
          %v1682 = vpop.f32.mrb[0].mxu0
          %1683 = vmatprep.mubr.f32.mxu0 0.0
          %1684 = vmatmul.mubr.f32.gmra.mrb[0].mxu0 %v1420
          %v1685 = vpop.f32.mrb[0].mxu0
          %v1686 = vadd.f32 0.0, %v1685
          %v1687 = vpop.f32.mrb[0].mxu0
          %1688 = vmatprep.mubr.f32.mxu0 0.0
          %1689 = vmatmul.mubr.f32.gmra.mrb[0].mxu0 %v1423
          %v1690 = vpop.f32.mrb[0].mxu0
          %v1691 = vadd.f32 0.0, %v1690
          %v1692 = vpop.f32.mrb[0].mxu0
          %1693 = vmatprep.mubr.f32.mxu0 0.0
          %1694 = vmatmul.mubr.f32.gmra.mrb[0].mxu0 %v1428
          %v1695 = vpop.f32.mrb[0].mxu0
          %v1696 = vadd.f32 0.0, %v1695
          %v1697 = vpop.f32.mrb[0].mxu0
          %1698 = vmatprep.mubr.f32.mxu0 0.0
          %1699 = vmatmul.mubr.f32.gmra.mrb[0].mxu0 %v1431
          %v1700 = vpop.f32.mrb[0].mxu0
          %v1701 = vadd.f32 0.0, %v1700
          %v1702 = vpop.f32.mrb[0].mxu0
          %1703 = vmatprep.mubr.f32.mxu0 0.0
          %1704 = vmatmul.mubr.f32.gmra.mrb[0].mxu0 %v1436
          %v1705 = vpop.f32.mrb[0].mxu0
          %v1706 = vadd.f32 0.0, %v1705
          %v1707 = vpop.f32.mrb[0].mxu0
          %1708 = vmatprep.mubr.f32.mxu0 0.0
          %1709 = vmatmul.mubr.f32.gmra.mrb[0].mxu0 %v1439
          %v1710 = vpop.f32.mrb[0].mxu0
          %v1711 = vadd.f32 0.0, %v1710
          %v1712 = vpop.f32.mrb[0].mxu0
          %1713 = vmatprep.mubr.f32.mxu0 0.0
          %1714 = vmatmul.mubr.f32.gmra.mrb[0].mxu0 %v1444
          %v1715 = vpop.f32.mrb[0].mxu0
          %v1716 = vadd.f32 0.0, %v1715
          %v1717 = vpop.f32.mrb[0].mxu0
          %1718 = vmatprep.mubr.f32.mxu0 0.0
          %1719 = vmatmul.mubr.f32.gmra.mrb[0].mxu0 %v1447
          %v1720 = vpop.f32.mrb[0].mxu0
          %v1721 = vadd.f32 0.0, %v1720
          %v1722 = vpop.f32.mrb[0].mxu0
          %1723 = vmatprep.mubr.f32.mxu0 0.0
          %1724 = vmatmul.mubr.f32.gmra.mrb[0].mxu0 %v1452
          %v1725 = vpop.f32.mrb[0].mxu0
          %v1726 = vadd.f32 0.0, %v1725
          %v1727 = vpop.f32.mrb[0].mxu0
          %1728 = vmatprep.mubr.f32.mxu0 0.0
          %1729 = vmatmul.mubr.f32.gmra.mrb[0].mxu0 %v1455
          %v1730 = vpop.f32.mrb[0].mxu0
          %v1731 = vadd.f32 0.0, %v1730
          %v1732 = vpop.f32.mrb[0].mxu0
          %1733 = vdwg.mxu0
          %v1734 = vadd.f32 %v1477, %v1576
          %v1735 = vadd.f32 %v1478, %v1581
          %v1736 = vadd.f32 %v1479, %v1586
          %v1737 = vadd.f32 %v1480, %v1591
          %v1738 = vadd.f32 %v1481, %v1596
          %v1739 = vadd.f32 %v1482, %v1601
          %v1740 = vadd.f32 %v1483, %v1606
          %v1741 = vadd.f32 %v1484, %v1611
          %v1742 = vadd.f32 %v1485, %v1616
          %v1743 = vadd.f32 %v1486, %v1621
          %v1744 = vadd.f32 %v1487, %v1626
          %v1745 = vadd.f32 %v1488, %v1631
          %v1746 = vadd.f32 %v1489, %v1636
          %v1747 = vadd.f32 %v1490, %v1641
          %v1748 = vadd.f32 %v1491, %v1646
          %v1749 = vadd.f32 %v1492, %v1651
          %v1750 = vadd.f32 %v1493, %v1656
          %v1751 = vadd.f32 %v1494, %v1661
          %v1752 = vadd.f32 %v1495, %v1666
          %v1753 = vadd.f32 %v1496, %v1671
          %v1754 = vadd.f32 %v1497, %v1676
          %v1755 = vadd.f32 %v1498, %v1681
          %v1756 = vadd.f32 %v1499, %v1686
          %v1757 = vadd.f32 %v1500, %v1691
          %v1758 = vadd.f32 %v1501, %v1696
          %v1759 = vadd.f32 %v1502, %v1701
          %v1760 = vadd.f32 %v1503, %v1706
          %v1761 = vadd.f32 %v1504, %v1711
          %v1762 = vadd.f32 %v1505, %v1716
          %v1763 = vadd.f32 %v1506, %v1721
          %v1764 = vadd.f32 %v1507, %v1726
          %v1765 = vadd.f32 %v1508, %v1731
          %1766 = vst [vmem:[%s392] sm:$0xff] %v1734
          %1767 = vst [vmem:[%s392 + $0x8] sm:$0xff] %v1735
          %1768 = vst [vmem:[%s392 + $0x10] sm:$0xff] %v1736
          %1769 = vst [vmem:[%s392 + $0x18] sm:$0xff] %v1737
          %1770 = vst [vmem:[%s392 + $0x20] sm:$0xff] %v1738
          %1771 = vst [vmem:[%s392 + $0x28] sm:$0xff] %v1739
          %1772 = vst [vmem:[%s392 + $0x30] sm:$0xff] %v1740
          %1773 = vst [vmem:[%s392 + $0x38] sm:$0xff] %v1741
          %1774 = vst [vmem:[%s392 + $0x40] sm:$0xff] %v1742
          %1775 = vst [vmem:[%s392 + $0x48] sm:$0xff] %v1743
          %1776 = vst [vmem:[%s392 + $0x50] sm:$0xff] %v1744
          %1777 = vst [vmem:[%s392 + $0x58] sm:$0xff] %v1745
          %1778 = vst [vmem:[%s392 + $0x60] sm:$0xff] %v1746
          %1779 = vst [vmem:[%s392 + $0x68] sm:$0xff] %v1747
          %1780 = vst [vmem:[%s392 + $0x70] sm:$0xff] %v1748
          %1781 = vst [vmem:[%s392 + $0x78] sm:$0xff] %v1749
          %1782 = vst [vmem:[%s392 + $0x80] sm:$0xff] %v1750
          %1783 = vst [vmem:[%s392 + $0x88] sm:$0xff] %v1751
          %1784 = vst [vmem:[%s392 + $0x90] sm:$0xff] %v1752
          %1785 = vst [vmem:[%s392 + $0x98] sm:$0xff] %v1753
          %1786 = vst [vmem:[%s392 + $0xa0] sm:$0xff] %v1754
          %1787 = vst [vmem:[%s392 + $0xa8] sm:$0xff] %v1755
          %1788 = vst [vmem:[%s392 + $0xb0] sm:$0xff] %v1756
          %1789 = vst [vmem:[%s392 + $0xb8] sm:$0xff] %v1757
          %1790 = vst [vmem:[%s392 + $0xc0] sm:$0xff] %v1758
          %1791 = vst [vmem:[%s392 + $0xc8] sm:$0xff] %v1759
          %1792 = vst [vmem:[%s392 + $0xd0] sm:$0xff] %v1760
          %1793 = vst [vmem:[%s392 + $0xd8] sm:$0xff] %v1761
          %1794 = vst [vmem:[%s392 + $0xe0] sm:$0xff] %v1762
          %1795 = vst [vmem:[%s392 + $0xe8] sm:$0xff] %v1763
          %1796 = vst [vmem:[%s392 + $0xf0] sm:$0xff] %v1764
          %1797 = vst [vmem:[%s392 + $0xf8] sm:$0xff] %v1765
        $region60: #{tpu_custom_call.1} parent=35 // pred_fallthru
          _
        %s1798 = sand.u32 %s195, 1
        %s1799 = scalar_lea.sflag [#allocation8], %s1798
        %s1800 = sand.u32 %s195, 1
        %s1801 = smul.addr %s1800, 256
        %s1802 = scalar_lea.vmem [#allocation14], %s1801
        // Predicated region
        $region61: #{tpu_custom_call.1} parent=35 // pred_check
          %p1803 = pneg %p205
        $region62: #{tpu_custom_call.1} parent=35 // pred_check_branch
          %1805 = sbr.rel (%p1803) target = $region64
        $region63: #{tpu_custom_call.1} parent=35 // pred_region
          %s1806 = smul.u32 32, %s42
          %s1808 = ssub.s32 4096, 4096
          %1809 = vsyncadd %s1799, %s1808
          %s1810 = smul.addr %s1806, 128
          %s1811 = scalar_lea.hbm %s7, %s1810
          %s1812 = sshll.u32 %s1802, 4
          %s1813 = int_to_ptr.vmem [resolvable:$true] %s1812
          %1818 = dma.vmem_to_hbm [thread:$0]  %s1813, 4096, %s1811, %s1799, 128, 128, 8
        $region64: #{tpu_custom_call.1} parent=35 // pred_fallthru
          _
      $region36: #{tpu_custom_call.1} parent=5 // pred_fallthru
        _
      %p1819 = scmp.le.s32.totalorder 2, %s33
      // Predicated region
      $region65: #{tpu_custom_call.1} parent=5 // pred_check
        %p1820 = pneg %p1819
      $region66: #{tpu_custom_call.1} parent=5 // pred_check_branch
        %1822 = sbr.rel (%p1820) target = $region68
      $region67: #{tpu_custom_call.1} parent=5 // pred_region
        %s1823 = ssub.s32 %s33, 2
        // Predicated region
        $region69: #{tpu_custom_call.1} parent=67 // pred_check
          %p1824 = pneg %p211
        $region70: #{tpu_custom_call.1} parent=67 // pred_check_branch
          %1826 = sbr.rel (%p1824) target = $region72
        $region71: #{tpu_custom_call.1} parent=67 // pred_region
          %s1827 = sand.u32 %s196, 1
          %s1828 = scalar_lea.sflag [#allocation8], %s1827
          %s1829 = sand.u32 %s196, 1
          %s1830 = smul.addr %s1829, 256
          %s1831 = scalar_lea.vmem [#allocation14], %s1830
          %1832 = dma.done %s1828, 4096
        $region72: #{tpu_custom_call.1} parent=67 // pred_fallthru
          _
      $region68: #{tpu_custom_call.1} parent=5 // pred_fallthru
        _
    $region6: #{tpu_custom_call.1} parent=1 // loop_footer
      %s37 = sadd.s32 1, %s33
    $region7: #{tpu_custom_call.1} parent=1 // loop_footer_branch
      %32 = sbr.rel target = $region3
    $region8: #{tpu_custom_call.1} parent=1 // loop_exit
      _
    %1833 = vsyncpa [#allocation7], 1
    %s1834 = scalar_lea.sflag [#allocation7], 1
    %1835 = vsyncpa %s1834, 1
    %1836 = vsyncpa [#allocation10], 1
    %s1837 = scalar_lea.sflag [#allocation10], 1
    %1838 = vsyncpa %s1837, 1
    %1839 = vsyncpa [#allocation13], 1
    %s1840 = scalar_lea.sflag [#allocation13], 1
    %1841 = vsyncpa %s1840, 1
    %1842 = vsyncpa [#allocation8], 1
    %s1843 = scalar_lea.sflag [#allocation8], 1
    %1844 = vsyncpa %s1843, 1

</llo_original>
